<compile_context>
chip_gen: v6e
topology: v6e:2x2x1
jax: 0.10.0
libtpu: 0.0.40
codegen_flags: <defaults>
</compile_context>

<pallas_src>
import numpy as np
import jax
import jax.numpy as jnp
from jax.experimental import pallas as pl
from jax.experimental.pallas import tpu as pltpu


# ---------------------------------------------------------------------------
# Trace-time constant builders (adaptive-pool windows / nearest indices).
# ---------------------------------------------------------------------------
def _windows(in_size, out_size):
    """PyTorch adaptive pooling windows [floor(i*I/O), ceil((i+1)*I/O))."""
    return [((i * in_size) // out_size, -((-(i + 1) * in_size) // out_size))
            for i in range(out_size)]


def _w_stage_consts(Wl, Wm):
    """Fused W-direction weight.

    Returns (w1, bw, invw, KW):
      w1   : (Wl, (1+KW)*Wm).  Cols [0, Wm) = 0/1 window-sum selector (avg
             path); col (1+d)*Wm + j = one-hot on input col (start_j + d) for
             the packed windowed-max path.
      bw   : (1, KW*Wm) additive bias (0 valid, -inf invalid offset).
      invw : (1, Wm) f32, 1/|window_j|.
    """
    wins = _windows(Wl, Wm)
    KW = max(b - a for a, b in wins)
    w1 = np.zeros((Wl, (1 + KW) * Wm), np.float32)
    bw = np.full((1, KW * Wm), -np.inf, np.float32)
    invw = np.zeros((1, Wm), np.float32)
    for j, (a, b) in enumerate(wins):
        w1[a:b, j] = 1.0
        invw[0, j] = 1.0 / (b - a)
        for d in range(b - a):
            w1[a + d, (1 + d) * Wm + j] = 1.0
            bw[0, d * Wm + j] = 0.0
    return w1, bw, invw, KW


def _h_stage_consts(Hl, Hm):
    """H-direction weights: 0/1 sum selector, packed max selectors, biases."""
    wins = _windows(Hl, Hm)
    KH = max(b - a for a, b in wins)
    ah = np.zeros((Hm, Hl), np.float32)           # avg: window sum selector
    sh = np.zeros((KH * Hm, Hl), np.float32)      # max: packed one-hot
    bh = np.full((KH * Hm, 1), -np.inf, np.float32)
    invh = np.zeros((Hm, 1), np.float32)
    for j, (a, b) in enumerate(wins):
        ah[j, a:b] = 1.0
        invh[j, 0] = 1.0 / (b - a)
        for d in range(b - a):
            sh[d * Hm + j, a + d] = 1.0
            bh[d * Hm + j, 0] = 0.0
    return ah, sh, bh, invh, KH


def _nearest(in_size, out_size):
    """(in_size, out_size) one-hot gather: column i picks floor(i*I/O)."""
    u = np.zeros((in_size, out_size), np.float32)
    for i in range(out_size):
        u[min((i * in_size) // out_size, in_size - 1), i] = 1.0
    return u


def _round_up(x, m):
    return -(-x // m) * m


# ---------------------------------------------------------------------------
# Kernel + wrapper
# ---------------------------------------------------------------------------
def zoom_cat(l, m, s):
    """Pallas TPU implementation of Zoom_cat.forward([l, m, s]) (NCHW)."""
    B, C, Hl, Wl = l.shape
    _, _, Hm, Wm = m.shape
    _, _, Hs, Ws = s.shape
    assert m.shape[:2] == (B, C) and s.shape[:2] == (B, C)
    assert l.dtype == m.dtype == s.dtype
    dt = l.dtype
    f32 = jnp.float32
    itm = jnp.dtype(dt).itemsize

    # ---- trace-time selector / scale constants ------------------------------
    w1_np, bw_np, invw_np, KW = _w_stage_consts(Wl, Wm)
    ah_np, sh_np, bh_np, invh_np, KH = _h_stage_consts(Hl, Hm)
    uw_np = _nearest(Ws, Wm)            # (Ws, Wm)
    uh_np = _nearest(Hs, Hm).T          # (Hm, Hs)

    # ---- generation-aware VMEM limit + padding-aware channel tile -----------
    cap = 128 * 1024 * 1024
    try:
        cap = int(getattr(pltpu.get_tpu_info(), "vmem_capacity_bytes", cap)) or cap
    except Exception:
        pass
    vmem_limit = min(96 * 1024 * 1024, int(0.75 * cap))  # ~96MiB v5e/v6e, ~48MiB v7x
    budget = int(0.6 * vmem_limit)

    HWp = _round_up(Hm * Wm, 128)

    def est_vmem(tc):
        L = lambda n: _round_up(max(n, 1), 128)   # lane padding
        S = lambda n: _round_up(max(n, 1), 16)    # sublane padding (conservative)
        by = 0
        # double-buffered input blocks
        by += 2 * itm * (S(tc * Hl) * L(Wl) + S(tc) * HWp + S(tc * Hs) * L(Ws))
        # double-buffered output block (3, tc, Hm*Wm)
        by += 2 * itm * 3 * S(tc) * HWp
        # resident constants (pipeline still reserves 2 buffers each)
        by += 2 * itm * (S(Wl) * L((1 + KW) * Wm) + S(Ws) * L(Wm))
        by += 2 * itm * tc * (S(Hm) * L(Hl) + S(KH * Hm) * L(Hl) + S(Hm) * L(Hs))
        by += 2 * 4 * (S(1) * L(KW * Wm) + S(1) * L(Wm)
                       + S(KH * Hm) * L(1) + S(Hm) * L(1))
        # in-kernel intermediates
        by += 4 * S(tc * Hl) * (L((1 + KW) * Wm) + L(KW * Wm))    # r1, cw (f32)
        by += itm * (2 * S(tc * Hl) + S(tc * Hs)) * L(Wm)         # ta, mw, tu
        by += 4 * tc * (2 * S(Hm) + S(KH * Hm)) * L(Wm)           # avg, up, ch
        by += 2 * itm * S(tc) * HWp                               # merge temps
        return int(by * 1.25)                                     # relayout fudge

    cands = sorted({C} | {t for t in range(8, C, 8) if C % t == 0}, reverse=True)
    TC = next((t for t in cands if est_vmem(t) <= budget), cands[-1])
    # v7x megacore: make sure the (parallel) grid has >= 2 steps when B == 1.
    if B * (C // TC) < 2:
        halves = [t for t in cands if C // t >= 2]
        if halves:
            TC = halves[0]
    n_ct = C // TC

    # ---- device-side constants ----------------------------------------------
    w1 = jnp.asarray(w1_np, dt)
    bw = jnp.asarray(bw_np, f32)
    invw = jnp.asarray(invw_np, f32)
    uw = jnp.asarray(uw_np, dt)
    bh = jnp.asarray(bh_np, f32)
    invh = jnp.asarray(invh_np, f32)
    # Pre-broadcast H-stage weights once (wrapper side); constant index_maps
    # keep them resident in VMEM, so no per-step broadcast inside the kernel.
    ahb = jnp.broadcast_to(jnp.asarray(ah_np, dt)[None], (TC, Hm, Hl))
    shb = jnp.broadcast_to(jnp.asarray(sh_np, dt)[None], (TC, KH * Hm, Hl))
    uhb = jnp.broadcast_to(jnp.asarray(uh_np, dt)[None], (TC, Hm, Hs))

    # Free reshapes: matmul-ready 2-D slabs for l/s, lane-dense flat m.
    l2 = l.reshape(B, C * Hl, Wl)
    s2 = s.reshape(B, C * Hs, Ws)
    m2 = m.reshape(B, C, Hm * Wm)

    def kernel(l_ref, m_ref, s_ref, w1_ref, bw_ref, invw_ref, uw_ref,
               ah_ref, sh_ref, bh_ref, invh_ref, uh_ref, out_ref):
        odt = out_ref.dtype

        # ---- stage 1: W direction, one fused MXU matmul for the large map ---
        r1 = jnp.dot(l_ref[...], w1_ref[...],
                     preferred_element_type=f32)            # (TC*Hl, (1+KW)*Wm)
        ta = (r1[:, 0:Wm] * invw_ref[...]).astype(odt)      # avg partial (TC*Hl, Wm)
        cw = r1[:, Wm:] + bw_ref[...]                       # packed max offsets
        mw = cw[:, 0:Wm]
        for d in range(1, KW):
            mw = jnp.maximum(mw, cw[:, d * Wm:(d + 1) * Wm])
        mw = mw.astype(odt)                                  # (TC*Hl, Wm)
        # nearest upsample of s along W: one-hot gather matmul
        tu = jnp.dot(s_ref[...], uw_ref[...],
                     preferred_element_type=f32).astype(odt)  # (TC*Hs, Wm)

        ta3 = ta.reshape(TC, Hl, Wm)
        mw3 = mw.reshape(TC, Hl, Wm)
        tu3 = tu.reshape(TC, Hs, Wm)

        # ---- stage 2: H direction, batched MXU matmuls (resident weights) ---
        dims = (((2,), (1,)), ((0,), (0,)))
        avg = jax.lax.dot_general(ah_ref[...], ta3, dims,
                                  preferred_element_type=f32) * invh_ref[...]
        ch = jax.lax.dot_general(sh_ref[...], mw3, dims,
                                 preferred_element_type=f32) + bh_ref[...]
        mx = ch[:, 0:Hm, :]
        for d in range(1, KH):
            mx = jnp.maximum(mx, ch[:, d * Hm:(d + 1) * Hm, :])
        up = jax.lax.dot_general(uh_ref[...], tu3, dims,
                                 preferred_element_type=f32)

        # ---- lane-dense (TC, Hm*Wm) stores ----------------------------------
        out_ref[0] = (avg + mx).astype(odt).reshape(TC, Hm * Wm)
        out_ref[1] = m_ref[...]
        out_ref[2] = up.astype(odt).reshape(TC, Hm * Wm)

    def const2(a):
        return pl.BlockSpec(a.shape, lambda b, c: (0, 0))

    def const3(a):
        return pl.BlockSpec(a.shape, lambda b, c: (0, 0, 0))

    out = pl.pallas_call(
        kernel,
        out_shape=jax.ShapeDtypeStruct((B, 3, C, Hm * Wm), dt),
        grid=(B, n_ct),
        in_specs=[
            pl.BlockSpec((None, TC * Hl, Wl), lambda b, c: (b, c, 0)),
            pl.BlockSpec((None, TC, Hm * Wm), lambda b, c: (b, c, 0)),
            pl.BlockSpec((None, TC * Hs, Ws), lambda b, c: (b, c, 0)),
            const2(w1), const2(bw), const2(invw), const2(uw),
            const3(ahb), const3(shb), const2(bh), const2(invh), const3(uhb),
        ],
        out_specs=pl.BlockSpec((None, 3, TC, Hm * Wm),
                               lambda b, c: (b, 0, c, 0)),
        compiler_params=pltpu.CompilerParams(
            dimension_semantics=("parallel", "parallel"),
            vmem_limit_bytes=vmem_limit,
        ),
    )(l2, m2, s2, w1, bw, invw, uw, ahb, shb, bh, invh, uhb)

    # (B, 3, C, Hm*Wm) -> (B, 3C, Hm, Wm): free reshape of contiguous dims.
    return out.reshape(B, 3 * C, Hm, Wm)


if __name__ == "__main__":
    key = jax.random.PRNGKey(0)
    k1, k2, k3 = jax.random.split(key, 3)

    # Typical Zoom_cat usage: l is 2x the spatial size of m, s is half.
    B, C, Hm, Wm = 2, 4, 16, 16
    l = jax.random.normal(k1, (B, C, 2 * Hm, 2 * Wm), jnp.float32)
    m = jax.random.normal(k2, (B, C, Hm, Wm), jnp.float32)
    s = jax.random.normal(k3, (B, C, Hm // 2, Wm // 2), jnp.float32)

    out = jax.block_until_ready(jax.jit(zoom_cat)(l, m, s))
    assert out.shape == (B, 3 * C, Hm, Wm)

    # Plain-JAX reference for these exact 2x ratios.
    lr = l.reshape(B, C, Hm, 2, Wm, 2)
    l_ref = lr.max(axis=(3, 5)) + lr.mean(axis=(3, 5))
    s_ref = jnp.repeat(jnp.repeat(s, 2, axis=2), 2, axis=3)
    ref = jnp.concatenate([l_ref, m, s_ref], axis=1)
    assert jnp.allclose(out, ref, atol=1e-4, rtol=1e-4), float(
        jnp.max(jnp.abs(out - ref)))

    print("KERNEL_OK")
</pallas_src>

<mosaic_0001>
module attributes {stable_mosaic.version = 11 : i64} {
  func.func @kernel(%arg0: i32, %arg1: i32, %arg2: memref<1x128x32xf32, #tpu.memory_space<vmem>>, %arg3: memref<1x4x256xf32, #tpu.memory_space<vmem>>, %arg4: memref<1x32x8xf32, #tpu.memory_space<vmem>>, %arg5: memref<32x48xf32, #tpu.memory_space<vmem>>, %arg6: memref<1x32xf32, #tpu.memory_space<vmem>>, %arg7: memref<1x16xf32, #tpu.memory_space<vmem>>, %arg8: memref<8x16xf32, #tpu.memory_space<vmem>>, %arg9: memref<4x16x32xf32, #tpu.memory_space<vmem>>, %arg10: memref<4x32x32xf32, #tpu.memory_space<vmem>>, %arg11: memref<32x1xf32, #tpu.memory_space<vmem>>, %arg12: memref<16x1xf32, #tpu.memory_space<vmem>>, %arg13: memref<4x16x8xf32, #tpu.memory_space<vmem>>, %arg14: memref<1x3x4x256xf32, #tpu.memory_space<vmem>>) attributes {dimension_semantics = [#tpu.dimension_semantics<parallel>, #tpu.dimension_semantics<parallel>], iteration_bounds = array<i64: 2, 1>, scalar_prefetch = 0 : i64, scratch_operands = 0 : i64, tpu.core_type = #tpu.core_type<tc>, window_params = [{transform_indices = @transform_0, window_bounds = array<i64: 1, 128, 32>}, {transform_indices = @transform_1, window_bounds = array<i64: 1, 4, 256>}, {transform_indices = @transform_2, window_bounds = array<i64: 1, 32, 8>}, {pipeline_mode = #tpu.pipeline_mode<synchronous>, transform_indices = @transform_3, window_bounds = array<i64: 32, 48>}, {pipeline_mode = #tpu.pipeline_mode<synchronous>, transform_indices = @transform_4, window_bounds = array<i64: 1, 32>}, {pipeline_mode = #tpu.pipeline_mode<synchronous>, transform_indices = @transform_5, window_bounds = array<i64: 1, 16>}, {pipeline_mode = #tpu.pipeline_mode<synchronous>, transform_indices = @transform_6, window_bounds = array<i64: 8, 16>}, {pipeline_mode = #tpu.pipeline_mode<synchronous>, transform_indices = @transform_7, window_bounds = array<i64: 4, 16, 32>}, {pipeline_mode = #tpu.pipeline_mode<synchronous>, transform_indices = @transform_8, window_bounds = array<i64: 4, 32, 32>}, {pipeline_mode = #tpu.pipeline_mode<synchronous>, transform_indices = @transform_9, window_bounds = array<i64: 32, 1>}, {pipeline_mode = #tpu.pipeline_mode<synchronous>, transform_indices = @transform_10, window_bounds = array<i64: 16, 1>}, {pipeline_mode = #tpu.pipeline_mode<synchronous>, transform_indices = @transform_11, window_bounds = array<i64: 4, 16, 8>}, {transform_indices = @transform_12, window_bounds = array<i64: 1, 3, 4, 256>}]} {
    %c0 = arith.constant 0 : index
    %c0_0 = arith.constant 0 : index
    %c0_1 = arith.constant 0 : index
    %0 = vector.load %arg2[%c0, %c0_0, %c0_1] : memref<1x128x32xf32, #tpu.memory_space<vmem>>, vector<1x128x32xf32>
    %1 = vector.shape_cast %0 : vector<1x128x32xf32> to vector<128x32xf32>
    %c0_2 = arith.constant 0 : index
    %c0_3 = arith.constant 0 : index
    %2 = vector.load %arg5[%c0_2, %c0_3] : memref<32x48xf32, #tpu.memory_space<vmem>>, vector<32x48xf32>
    %cst = arith.constant dense<0.000000e+00> : vector<128x48xf32>
    %3 = tpu.matmul %1, %2, %cst {dimension_numbers = #tpu.dot_dimension_numbers<[1], [0], [0], [1], [0, 0, 1, 1], [], []>} : vector<128x32xf32>, vector<32x48xf32>, vector<128x48xf32> -> vector<128x48xf32>
    %4 = vector.extract_strided_slice %3 {offsets = [0, 0], sizes = [128, 16], strides = [1, 1]} : vector<128x48xf32> to vector<128x16xf32>
    %c0_4 = arith.constant 0 : index
    %c0_5 = arith.constant 0 : index
    %5 = vector.load %arg7[%c0_4, %c0_5] : memref<1x16xf32, #tpu.memory_space<vmem>>, vector<1x16xf32>
    %6 = vector.broadcast %5 : vector<1x16xf32> to vector<128x16xf32>
    %7 = arith.mulf %4, %6 : vector<128x16xf32>
    %8 = vector.extract_strided_slice %3 {offsets = [0, 16], sizes = [128, 32], strides = [1, 1]} : vector<128x48xf32> to vector<128x32xf32>
    %c0_6 = arith.constant 0 : index
    %c0_7 = arith.constant 0 : index
    %9 = vector.load %arg6[%c0_6, %c0_7] : memref<1x32xf32, #tpu.memory_space<vmem>>, vector<1x32xf32>
    %10 = vector.broadcast %9 : vector<1x32xf32> to vector<128x32xf32>
    %11 = arith.addf %8, %10 : vector<128x32xf32>
    %12 = vector.extract_strided_slice %11 {offsets = [0, 0], sizes = [128, 16], strides = [1, 1]} : vector<128x32xf32> to vector<128x16xf32>
    %13 = vector.extract_strided_slice %11 {offsets = [0, 16], sizes = [128, 16], strides = [1, 1]} : vector<128x32xf32> to vector<128x16xf32>
    %14 = arith.maximumf %12, %13 : vector<128x16xf32>
    %c0_8 = arith.constant 0 : index
    %c0_9 = arith.constant 0 : index
    %c0_10 = arith.constant 0 : index
    %15 = vector.load %arg4[%c0_8, %c0_9, %c0_10] : memref<1x32x8xf32, #tpu.memory_space<vmem>>, vector<1x32x8xf32>
    %16 = vector.shape_cast %15 : vector<1x32x8xf32> to vector<32x8xf32>
    %c0_11 = arith.constant 0 : index
    %c0_12 = arith.constant 0 : index
    %17 = vector.load %arg8[%c0_11, %c0_12] : memref<8x16xf32, #tpu.memory_space<vmem>>, vector<8x16xf32>
    %cst_13 = arith.constant dense<0.000000e+00> : vector<32x16xf32>
    %18 = tpu.matmul %16, %17, %cst_13 {dimension_numbers = #tpu.dot_dimension_numbers<[1], [0], [0], [1], [0, 0, 1, 1], [], []>} : vector<32x8xf32>, vector<8x16xf32>, vector<32x16xf32> -> vector<32x16xf32>
    %19 = vector.shape_cast %7 : vector<128x16xf32> to vector<4x32x16xf32>
    %20 = vector.shape_cast %14 : vector<128x16xf32> to vector<4x32x16xf32>
    %21 = vector.shape_cast %18 : vector<32x16xf32> to vector<4x8x16xf32>
    %c0_14 = arith.constant 0 : index
    %c0_15 = arith.constant 0 : index
    %c0_16 = arith.constant 0 : index
    %22 = vector.load %arg9[%c0_14, %c0_15, %c0_16] : memref<4x16x32xf32, #tpu.memory_space<vmem>>, vector<4x16x32xf32>
    %cst_17 = arith.constant dense<0.000000e+00> : vector<4x16x16xf32>
    %23 = tpu.matmul %22, %19, %cst_17 {dimension_numbers = #tpu.dot_dimension_numbers<[2], [1], [1], [2], [0, 0, 0, 1, 1, 2], [0], [0]>} : vector<4x16x32xf32>, vector<4x32x16xf32>, vector<4x16x16xf32> -> vector<4x16x16xf32>
    %c0_18 = arith.constant 0 : index
    %c0_19 = arith.constant 0 : index
    %24 = vector.load %arg12[%c0_18, %c0_19] : memref<16x1xf32, #tpu.memory_space<vmem>>, vector<16x1xf32>
    %25 = vector.shape_cast %24 : vector<16x1xf32> to vector<1x16x1xf32>
    %26 = vector.broadcast %25 : vector<1x16x1xf32> to vector<4x16x16xf32>
    %27 = arith.mulf %23, %26 : vector<4x16x16xf32>
    %c0_20 = arith.constant 0 : index
    %c0_21 = arith.constant 0 : index
    %c0_22 = arith.constant 0 : index
    %28 = vector.load %arg10[%c0_20, %c0_21, %c0_22] : memref<4x32x32xf32, #tpu.memory_space<vmem>>, vector<4x32x32xf32>
    %cst_23 = arith.constant dense<0.000000e+00> : vector<4x32x16xf32>
    %29 = tpu.matmul %28, %20, %cst_23 {dimension_numbers = #tpu.dot_dimension_numbers<[2], [1], [1], [2], [0, 0, 0, 1, 1, 2], [0], [0]>} : vector<4x32x32xf32>, vector<4x32x16xf32>, vector<4x32x16xf32> -> vector<4x32x16xf32>
    %c0_24 = arith.constant 0 : index
    %c0_25 = arith.constant 0 : index
    %30 = vector.load %arg11[%c0_24, %c0_25] : memref<32x1xf32, #tpu.memory_space<vmem>>, vector<32x1xf32>
    %31 = vector.shape_cast %30 : vector<32x1xf32> to vector<1x32x1xf32>
    %32 = vector.broadcast %31 : vector<1x32x1xf32> to vector<4x32x16xf32>
    %33 = arith.addf %29, %32 : vector<4x32x16xf32>
    %34 = vector.extract_strided_slice %33 {offsets = [0, 0, 0], sizes = [4, 16, 16], strides = [1, 1, 1]} : vector<4x32x16xf32> to vector<4x16x16xf32>
    %35 = vector.extract_strided_slice %33 {offsets = [0, 16, 0], sizes = [4, 16, 16], strides = [1, 1, 1]} : vector<4x32x16xf32> to vector<4x16x16xf32>
    %36 = arith.maximumf %34, %35 : vector<4x16x16xf32>
    %c0_26 = arith.constant 0 : index
    %c0_27 = arith.constant 0 : index
    %c0_28 = arith.constant 0 : index
    %37 = vector.load %arg13[%c0_26, %c0_27, %c0_28] : memref<4x16x8xf32, #tpu.memory_space<vmem>>, vector<4x16x8xf32>
    %cst_29 = arith.constant dense<0.000000e+00> : vector<4x16x16xf32>
    %38 = tpu.matmul %37, %21, %cst_29 {dimension_numbers = #tpu.dot_dimension_numbers<[2], [1], [1], [2], [0, 0, 0, 1, 1, 2], [0], [0]>} : vector<4x16x8xf32>, vector<4x8x16xf32>, vector<4x16x16xf32> -> vector<4x16x16xf32>
    %39 = arith.addf %27, %36 : vector<4x16x16xf32>
    %40 = vector.shape_cast %39 : vector<4x16x16xf32> to vector<4x256xf32>
    %c0_30 = arith.constant 0 : index
    %c0_31 = arith.constant 0 : index
    %c0_32 = arith.constant 0 : index
    %c0_33 = arith.constant 0 : index
    %41 = vector.load %arg14[%c0_30, %c0_31, %c0_32, %c0_33] : memref<1x3x4x256xf32, #tpu.memory_space<vmem>>, vector<1x1x4x256xf32>
    %42 = vector.shape_cast %41 : vector<1x1x4x256xf32> to vector<4x256xf32>
    %43 = vector.shape_cast %40 : vector<4x256xf32> to vector<1x1x4x256xf32>
    tpu.vector_store %arg14[%c0_30, %c0_31, %c0_32, %c0_33], %43 {strides = array<i32>} : memref<1x3x4x256xf32, #tpu.memory_space<vmem>>, vector<1x1x4x256xf32>,
    %c0_34 = arith.constant 0 : index
    %c0_35 = arith.constant 0 : index
    %c0_36 = arith.constant 0 : index
    %44 = vector.load %arg3[%c0_34, %c0_35, %c0_36] : memref<1x4x256xf32, #tpu.memory_space<vmem>>, vector<1x4x256xf32>
    %45 = vector.shape_cast %44 : vector<1x4x256xf32> to vector<4x256xf32>
    %c0_37 = arith.constant 0 : index
    %c1 = arith.constant 1 : index
    %c0_38 = arith.constant 0 : index
    %c0_39 = arith.constant 0 : index
    %46 = vector.load %arg14[%c0_37, %c1, %c0_38, %c0_39] : memref<1x3x4x256xf32, #tpu.memory_space<vmem>>, vector<1x1x4x256xf32>
    %47 = vector.shape_cast %46 : vector<1x1x4x256xf32> to vector<4x256xf32>
    %48 = vector.shape_cast %45 : vector<4x256xf32> to vector<1x1x4x256xf32>
    tpu.vector_store %arg14[%c0_37, %c1, %c0_38, %c0_39], %48 {strides = array<i32>} : memref<1x3x4x256xf32, #tpu.memory_space<vmem>>, vector<1x1x4x256xf32>,
    %49 = vector.shape_cast %38 : vector<4x16x16xf32> to vector<4x256xf32>
    %c0_40 = arith.constant 0 : index
    %c2 = arith.constant 2 : index
    %c0_41 = arith.constant 0 : index
    %c0_42 = arith.constant 0 : index
    %50 = vector.load %arg14[%c0_40, %c2, %c0_41, %c0_42] : memref<1x3x4x256xf32, #tpu.memory_space<vmem>>, vector<1x1x4x256xf32>
    %51 = vector.shape_cast %50 : vector<1x1x4x256xf32> to vector<4x256xf32>
    %52 = vector.shape_cast %49 : vector<4x256xf32> to vector<1x1x4x256xf32>
    tpu.vector_store %arg14[%c0_40, %c2, %c0_41, %c0_42], %52 {strides = array<i32>} : memref<1x3x4x256xf32, #tpu.memory_space<vmem>>, vector<1x1x4x256xf32>,
    return
  }
  func.func @transform_0(%arg0: i32, %arg1: i32) -> (i32, i32, i32) {
    %c0_i32 = arith.constant 0 : i32
    %c0_i32_0 = arith.constant 0 : i32
    return %arg0, %arg1, %c0_i32 : i32, i32, i32
  }
  func.func @transform_1(%arg0: i32, %arg1: i32) -> (i32, i32, i32) {
    %c0_i32 = arith.constant 0 : i32
    %c0_i32_0 = arith.constant 0 : i32
    return %arg0, %arg1, %c0_i32 : i32, i32, i32
  }
  func.func @transform_2(%arg0: i32, %arg1: i32) -> (i32, i32, i32) {
    %c0_i32 = arith.constant 0 : i32
    %c0_i32_0 = arith.constant 0 : i32
    return %arg0, %arg1, %c0_i32 : i32, i32, i32
  }
  func.func @transform_3(%arg0: i32, %arg1: i32) -> (i32, i32) {
    %c0_i32 = arith.constant 0 : i32
    %c0_i32_0 = arith.constant 0 : i32
    %c0_i32_1 = arith.constant 0 : i32
    return %c0_i32, %c0_i32_0 : i32, i32
  }
  func.func @transform_4(%arg0: i32, %arg1: i32) -> (i32, i32) {
    %c0_i32 = arith.constant 0 : i32
    %c0_i32_0 = arith.constant 0 : i32
    %c0_i32_1 = arith.constant 0 : i32
    return %c0_i32, %c0_i32_0 : i32, i32
  }
  func.func @transform_5(%arg0: i32, %arg1: i32) -> (i32, i32) {
    %c0_i32 = arith.constant 0 : i32
    %c0_i32_0 = arith.constant 0 : i32
    %c0_i32_1 = arith.constant 0 : i32
    return %c0_i32, %c0_i32_0 : i32, i32
  }
  func.func @transform_6(%arg0: i32, %arg1: i32) -> (i32, i32) {
    %c0_i32 = arith.constant 0 : i32
    %c0_i32_0 = arith.constant 0 : i32
    %c0_i32_1 = arith.constant 0 : i32
    return %c0_i32, %c0_i32_0 : i32, i32
  }
  func.func @transform_7(%arg0: i32, %arg1: i32) -> (i32, i32, i32) {
    %c0_i32 = arith.constant 0 : i32
    %c0_i32_0 = arith.constant 0 : i32
    %c0_i32_1 = arith.constant 0 : i32
    %c0_i32_2 = arith.constant 0 : i32
    return %c0_i32, %c0_i32_0, %c0_i32_1 : i32, i32, i32
  }
  func.func @transform_8(%arg0: i32, %arg1: i32) -> (i32, i32, i32) {
    %c0_i32 = arith.constant 0 : i32
    %c0_i32_0 = arith.constant 0 : i32
    %c0_i32_1 = arith.constant 0 : i32
    %c0_i32_2 = arith.constant 0 : i32
    return %c0_i32, %c0_i32_0, %c0_i32_1 : i32, i32, i32
  }
  func.func @transform_9(%arg0: i32, %arg1: i32) -> (i32, i32) {
    %c0_i32 = arith.constant 0 : i32
    %c0_i32_0 = arith.constant 0 : i32
    %c0_i32_1 = arith.constant 0 : i32
    return %c0_i32, %c0_i32_0 : i32, i32
  }
  func.func @transform_10(%arg0: i32, %arg1: i32) -> (i32, i32) {
    %c0_i32 = arith.constant 0 : i32
    %c0_i32_0 = arith.constant 0 : i32
    %c0_i32_1 = arith.constant 0 : i32
    return %c0_i32, %c0_i32_0 : i32, i32
  }
  func.func @transform_11(%arg0: i32, %arg1: i32) -> (i32, i32, i32) {
    %c0_i32 = arith.constant 0 : i32
    %c0_i32_0 = arith.constant 0 : i32
    %c0_i32_1 = arith.constant 0 : i32
    %c0_i32_2 = arith.constant 0 : i32
    return %c0_i32, %c0_i32_0, %c0_i32_1 : i32, i32, i32
  }
  func.func @transform_12(%arg0: i32, %arg1: i32) -> (i32, i32, i32, i32) {
    %c0_i32 = arith.constant 0 : i32
    %c0_i32_0 = arith.constant 0 : i32
    %c0_i32_1 = arith.constant 0 : i32
    return %arg0, %c0_i32, %arg1, %c0_i32_0 : i32, i32, i32, i32
  }
}

</mosaic_0001>

<llo_original>
// kernel: zoom_cat.1
$region0: #{zoom_cat.1}
  #allocation0 [shape = 'u32[]', space=smem, size = 0x4, offset = 0x4, fixed_abs, tag = 'smem constant byte address 0x4 - core index']
  #allocation1 [shape = 'u32[144,128]{1,0:T(1,128)}', space=vmem, size = 0x12000, scoped, tag = 'internal scratch']
  %s0 = inlined_call_operand.vmem [shape: f32[2,128,32], index: 0, kind: input, shape index: {}]
  %s1 = inlined_call_operand.vmem [shape: f32[2,4,256], index: 1, kind: input, shape index: {}]
  %s2 = inlined_call_operand.vmem [shape: f32[2,32,8], index: 2, kind: input, shape index: {}]
  %s3 = inlined_call_operand.vmem [shape: f32[32,48], index: 3, kind: input, shape index: {}]
  %s4 = inlined_call_operand.vmem [shape: f32[1,32], index: 4, kind: input, shape index: {}]
  %s5 = inlined_call_operand.vmem [shape: f32[1,16], index: 5, kind: input, shape index: {}]
  %s6 = inlined_call_operand.vmem [shape: f32[8,16], index: 6, kind: input, shape index: {}]
  %s7 = inlined_call_operand.vmem [shape: f32[4,16,32], index: 7, kind: input, shape index: {}]
  %s8 = inlined_call_operand.vmem [shape: f32[4,32,32], index: 8, kind: input, shape index: {}]
  %s9 = inlined_call_operand.vmem [shape: f32[32,1], index: 9, kind: input, shape index: {}]
  %s10 = inlined_call_operand.vmem [shape: f32[16,1], index: 10, kind: input, shape index: {}]
  %s11 = inlined_call_operand.vmem [shape: f32[4,16,8], index: 11, kind: input, shape index: {}]
  %s12 = inlined_call_operand.vmem [shape: f32[2,3,4,256], index: 12, kind: output, shape index: {}]
  %s13 = sld [smem:[#allocation0]]
  $region81: #{zoom_cat.1} parent=0
    _
  %s15 = ssub.s32 1, %s13
  %s16 = scalar_select 0, %s15, %s13
  loop: start=0, step=1, limit=4
  $region2: #{zoom_cat.1} parent=0 // loop_pre_header
    _
  $region3: #{zoom_cat.1} parent=0 // loop_header
    %s18 = sphi 0, %s22
    %p19 = scmp.ge.s32.totalorder %s18, 4
    %s25 = sphi 0, %s37
    %s26 = sphi 0, %s33
    %s27 = sphi 0, %s25
    %s28 = sphi 0, %s26
    %s29 = sphi 0, %s27
    %s30 = sphi 0, %s28
    %s42 = sphi 0, %s44
    %s45 = sphi 0, %s42
    %s46 = sphi 0, %s45
    %s62 = sphi 0, %s46
    %s70 = sphi 0, %s72
    %s73 = sphi 0, %s70
    %s74 = sphi 0, %s73
    %s90 = sphi 0, %s74
    %s98 = sphi 0, %s100
    %s101 = sphi 0, %s98
    %s102 = sphi 0, %s101
    %s118 = sphi 0, %s102
    %s122 = sphi 0, %s122
    %s124 = sphi 0, %s122
    %s125 = sphi 0, %s124
    %s139 = sphi 0, %s125
    %s143 = sphi 0, %s143
    %s145 = sphi 0, %s143
    %s146 = sphi 0, %s145
    %s160 = sphi 0, %s146
    %s164 = sphi 0, %s164
    %s166 = sphi 0, %s164
    %s167 = sphi 0, %s166
    %s181 = sphi 0, %s167
    %s185 = sphi 0, %s185
    %s187 = sphi 0, %s185
    %s188 = sphi 0, %s187
    %s202 = sphi 0, %s188
    %s206 = sphi 0, %s206
    %s208 = sphi 0, %s206
    %s209 = sphi 0, %s208
    %s223 = sphi 0, %s209
    %s227 = sphi 0, %s227
    %s229 = sphi 0, %s227
    %s230 = sphi 0, %s229
    %s244 = sphi 0, %s230
    %s248 = sphi 0, %s248
    %s250 = sphi 0, %s248
    %s251 = sphi 0, %s250
    %s265 = sphi 0, %s251
    %s269 = sphi 0, %s269
    %s271 = sphi 0, %s269
    %s272 = sphi 0, %s271
    %s286 = sphi 0, %s272
    %s290 = sphi 0, %s290
    %s292 = sphi 0, %s290
    %s293 = sphi 0, %s292
    %s307 = sphi 0, %s293
    %s315 = sphi 0, %s317
    %s318 = sphi 0, %s315
    %s319 = sphi 0, %s318
    %s335 = sphi 0, %s319
  $region4: #{zoom_cat.1} parent=0 // loop_header_branch
    %21 = sbr.rel (%p19) target = $region8
  $region5: #{zoom_cat.1} parent=0 // loop_body
    %s23 = ssub.s32 %s18, 1
    %s24 = ssub.s32 %s18, 2
    %s31 = sadd.s32 1, %s26
    %p32 = scmp.ge.s32.totalorder %s31, 1
    %s33 = scalar_select %p32, 0, %s31
    %s34 = sadd.s32 1, %s25
    %s35 = scalar_select %p32, %s34, %s25
    %p36 = scmp.ge.s32.totalorder %s35, 2
    %s37 = scalar_select %p36, 0, %s35
    %s38 = ssub.s32 %s25, %s37
    %s39 = ssub.s32 %s26, %s33
    %s40 = sor.u32 %s38, %s39
    %p41 = scmp.eq.s32.totalorder %s40, 0
    %s43 = sadd.s32 %s42, 1
    %s44 = scalar_select %p41, %s42, %s43
    %p47 = pneg %p41
    %p48 = scmp.eq.s32.totalorder %s18, 1
    %p49 = por %p47, %p48
    %p50 = scmp.ne.s32.totalorder %s42, %s45
    %p51 = scmp.eq.s32.totalorder %s18, 0
    %p52 = por %p50, %p51
    %p53 = scmp.ne.s32.totalorder %s42, %s45
    %p54 = scmp.eq.s32.totalorder %s23, 1
    %p55 = por %p53, %p54
    %p56 = scmp.ne.s32.totalorder %s45, %s46
    %p57 = scmp.eq.s32.totalorder %s23, 0
    %p58 = por %p56, %p57
    %p59 = scmp.ne.s32.totalorder %s45, %s46
    %p60 = scmp.eq.s32.totalorder %s24, 1
    %p61 = por %p59, %p60
    %p63 = scmp.ne.s32.totalorder %s46, %s62
    %p64 = scmp.eq.s32.totalorder %s24, 0
    %p65 = por %p63, %p64
    %s66 = ssub.s32 %s25, %s37
    %s67 = ssub.s32 %s26, %s33
    %s68 = sor.u32 %s66, %s67
    %p69 = scmp.eq.s32.totalorder %s68, 0
    %s71 = sadd.s32 %s70, 1
    %s72 = scalar_select %p69, %s70, %s71
    %p75 = pneg %p69
    %p76 = scmp.eq.s32.totalorder %s18, 1
    %p77 = por %p75, %p76
    %p78 = scmp.ne.s32.totalorder %s70, %s73
    %p79 = scmp.eq.s32.totalorder %s18, 0
    %p80 = por %p78, %p79
    %p81 = scmp.ne.s32.totalorder %s70, %s73
    %p82 = scmp.eq.s32.totalorder %s23, 1
    %p83 = por %p81, %p82
    %p84 = scmp.ne.s32.totalorder %s73, %s74
    %p85 = scmp.eq.s32.totalorder %s23, 0
    %p86 = por %p84, %p85
    %p87 = scmp.ne.s32.totalorder %s73, %s74
    %p88 = scmp.eq.s32.totalorder %s24, 1
    %p89 = por %p87, %p88
    %p91 = scmp.ne.s32.totalorder %s74, %s90
    %p92 = scmp.eq.s32.totalorder %s24, 0
    %p93 = por %p91, %p92
    %s94 = ssub.s32 %s25, %s37
    %s95 = ssub.s32 %s26, %s33
    %s96 = sor.u32 %s94, %s95
    %p97 = scmp.eq.s32.totalorder %s96, 0
    %s99 = sadd.s32 %s98, 1
    %s100 = scalar_select %p97, %s98, %s99
    %p103 = pneg %p97
    %p104 = scmp.eq.s32.totalorder %s18, 1
    %p105 = por %p103, %p104
    %p106 = scmp.ne.s32.totalorder %s98, %s101
    %p107 = scmp.eq.s32.totalorder %s18, 0
    %p108 = por %p106, %p107
    %p109 = scmp.ne.s32.totalorder %s98, %s101
    %p110 = scmp.eq.s32.totalorder %s23, 1
    %p111 = por %p109, %p110
    %p112 = scmp.ne.s32.totalorder %s101, %s102
    %p113 = scmp.eq.s32.totalorder %s23, 0
    %p114 = por %p112, %p113
    %p115 = scmp.ne.s32.totalorder %s101, %s102
    %p116 = scmp.eq.s32.totalorder %s24, 1
    %p117 = por %p115, %p116
    %p119 = scmp.ne.s32.totalorder %s102, %s118
    %p120 = scmp.eq.s32.totalorder %s24, 0
    %p121 = por %p119, %p120
    %s123 = sadd.s32 %s122, 1
    %p126 = scmp.eq.s32.totalorder %s18, 1
    %p127 = scmp.ne.s32.totalorder %s122, %s124
    %p128 = scmp.eq.s32.totalorder %s18, 0
    %p129 = por %p127, %p128
    %p130 = scmp.ne.s32.totalorder %s122, %s124
    %p131 = scmp.eq.s32.totalorder %s23, 1
    %p132 = por %p130, %p131
    %p133 = scmp.ne.s32.totalorder %s124, %s125
    %p134 = scmp.eq.s32.totalorder %s23, 0
    %p135 = por %p133, %p134
    %p136 = scmp.ne.s32.totalorder %s124, %s125
    %p137 = scmp.eq.s32.totalorder %s24, 1
    %p138 = por %p136, %p137
    %p140 = scmp.ne.s32.totalorder %s125, %s139
    %p141 = scmp.eq.s32.totalorder %s24, 0
    %p142 = por %p140, %p141
    %s144 = sadd.s32 %s143, 1
    %p147 = scmp.eq.s32.totalorder %s18, 1
    %p148 = scmp.ne.s32.totalorder %s143, %s145
    %p149 = scmp.eq.s32.totalorder %s18, 0
    %p150 = por %p148, %p149
    %p151 = scmp.ne.s32.totalorder %s143, %s145
    %p152 = scmp.eq.s32.totalorder %s23, 1
    %p153 = por %p151, %p152
    %p154 = scmp.ne.s32.totalorder %s145, %s146
    %p155 = scmp.eq.s32.totalorder %s23, 0
    %p156 = por %p154, %p155
    %p157 = scmp.ne.s32.totalorder %s145, %s146
    %p158 = scmp.eq.s32.totalorder %s24, 1
    %p159 = por %p157, %p158
    %p161 = scmp.ne.s32.totalorder %s146, %s160
    %p162 = scmp.eq.s32.totalorder %s24, 0
    %p163 = por %p161, %p162
    %s165 = sadd.s32 %s164, 1
    %p168 = scmp.eq.s32.totalorder %s18, 1
    %p169 = scmp.ne.s32.totalorder %s164, %s166
    %p170 = scmp.eq.s32.totalorder %s18, 0
    %p171 = por %p169, %p170
    %p172 = scmp.ne.s32.totalorder %s164, %s166
    %p173 = scmp.eq.s32.totalorder %s23, 1
    %p174 = por %p172, %p173
    %p175 = scmp.ne.s32.totalorder %s166, %s167
    %p176 = scmp.eq.s32.totalorder %s23, 0
    %p177 = por %p175, %p176
    %p178 = scmp.ne.s32.totalorder %s166, %s167
    %p179 = scmp.eq.s32.totalorder %s24, 1
    %p180 = por %p178, %p179
    %p182 = scmp.ne.s32.totalorder %s167, %s181
    %p183 = scmp.eq.s32.totalorder %s24, 0
    %p184 = por %p182, %p183
    %s186 = sadd.s32 %s185, 1
    %p189 = scmp.eq.s32.totalorder %s18, 1
    %p190 = scmp.ne.s32.totalorder %s185, %s187
    %p191 = scmp.eq.s32.totalorder %s18, 0
    %p192 = por %p190, %p191
    %p193 = scmp.ne.s32.totalorder %s185, %s187
    %p194 = scmp.eq.s32.totalorder %s23, 1
    %p195 = por %p193, %p194
    %p196 = scmp.ne.s32.totalorder %s187, %s188
    %p197 = scmp.eq.s32.totalorder %s23, 0
    %p198 = por %p196, %p197
    %p199 = scmp.ne.s32.totalorder %s187, %s188
    %p200 = scmp.eq.s32.totalorder %s24, 1
    %p201 = por %p199, %p200
    %p203 = scmp.ne.s32.totalorder %s188, %s202
    %p204 = scmp.eq.s32.totalorder %s24, 0
    %p205 = por %p203, %p204
    %s207 = sadd.s32 %s206, 1
    %p210 = scmp.eq.s32.totalorder %s18, 1
    %p211 = scmp.ne.s32.totalorder %s206, %s208
    %p212 = scmp.eq.s32.totalorder %s18, 0
    %p213 = por %p211, %p212
    %p214 = scmp.ne.s32.totalorder %s206, %s208
    %p215 = scmp.eq.s32.totalorder %s23, 1
    %p216 = por %p214, %p215
    %p217 = scmp.ne.s32.totalorder %s208, %s209
    %p218 = scmp.eq.s32.totalorder %s23, 0
    %p219 = por %p217, %p218
    %p220 = scmp.ne.s32.totalorder %s208, %s209
    %p221 = scmp.eq.s32.totalorder %s24, 1
    %p222 = por %p220, %p221
    %p224 = scmp.ne.s32.totalorder %s209, %s223
    %p225 = scmp.eq.s32.totalorder %s24, 0
    %p226 = por %p224, %p225
    %s228 = sadd.s32 %s227, 1
    %p231 = scmp.eq.s32.totalorder %s18, 1
    %p232 = scmp.ne.s32.totalorder %s227, %s229
    %p233 = scmp.eq.s32.totalorder %s18, 0
    %p234 = por %p232, %p233
    %p235 = scmp.ne.s32.totalorder %s227, %s229
    %p236 = scmp.eq.s32.totalorder %s23, 1
    %p237 = por %p235, %p236
    %p238 = scmp.ne.s32.totalorder %s229, %s230
    %p239 = scmp.eq.s32.totalorder %s23, 0
    %p240 = por %p238, %p239
    %p241 = scmp.ne.s32.totalorder %s229, %s230
    %p242 = scmp.eq.s32.totalorder %s24, 1
    %p243 = por %p241, %p242
    %p245 = scmp.ne.s32.totalorder %s230, %s244
    %p246 = scmp.eq.s32.totalorder %s24, 0
    %p247 = por %p245, %p246
    %s249 = sadd.s32 %s248, 1
    %p252 = scmp.eq.s32.totalorder %s18, 1
    %p253 = scmp.ne.s32.totalorder %s248, %s250
    %p254 = scmp.eq.s32.totalorder %s18, 0
    %p255 = por %p253, %p254
    %p256 = scmp.ne.s32.totalorder %s248, %s250
    %p257 = scmp.eq.s32.totalorder %s23, 1
    %p258 = por %p256, %p257
    %p259 = scmp.ne.s32.totalorder %s250, %s251
    %p260 = scmp.eq.s32.totalorder %s23, 0
    %p261 = por %p259, %p260
    %p262 = scmp.ne.s32.totalorder %s250, %s251
    %p263 = scmp.eq.s32.totalorder %s24, 1
    %p264 = por %p262, %p263
    %p266 = scmp.ne.s32.totalorder %s251, %s265
    %p267 = scmp.eq.s32.totalorder %s24, 0
    %p268 = por %p266, %p267
    %s270 = sadd.s32 %s269, 1
    %p273 = scmp.eq.s32.totalorder %s18, 1
    %p274 = scmp.ne.s32.totalorder %s269, %s271
    %p275 = scmp.eq.s32.totalorder %s18, 0
    %p276 = por %p274, %p275
    %p277 = scmp.ne.s32.totalorder %s269, %s271
    %p278 = scmp.eq.s32.totalorder %s23, 1
    %p279 = por %p277, %p278
    %p280 = scmp.ne.s32.totalorder %s271, %s272
    %p281 = scmp.eq.s32.totalorder %s23, 0
    %p282 = por %p280, %p281
    %p283 = scmp.ne.s32.totalorder %s271, %s272
    %p284 = scmp.eq.s32.totalorder %s24, 1
    %p285 = por %p283, %p284
    %p287 = scmp.ne.s32.totalorder %s272, %s286
    %p288 = scmp.eq.s32.totalorder %s24, 0
    %p289 = por %p287, %p288
    %s291 = sadd.s32 %s290, 1
    %p294 = scmp.eq.s32.totalorder %s18, 1
    %p295 = scmp.ne.s32.totalorder %s290, %s292
    %p296 = scmp.eq.s32.totalorder %s18, 0
    %p297 = por %p295, %p296
    %p298 = scmp.ne.s32.totalorder %s290, %s292
    %p299 = scmp.eq.s32.totalorder %s23, 1
    %p300 = por %p298, %p299
    %p301 = scmp.ne.s32.totalorder %s292, %s293
    %p302 = scmp.eq.s32.totalorder %s23, 0
    %p303 = por %p301, %p302
    %p304 = scmp.ne.s32.totalorder %s292, %s293
    %p305 = scmp.eq.s32.totalorder %s24, 1
    %p306 = por %p304, %p305
    %p308 = scmp.ne.s32.totalorder %s293, %s307
    %p309 = scmp.eq.s32.totalorder %s24, 0
    %p310 = por %p308, %p309
    %s311 = ssub.s32 %s25, %s37
    %s312 = ssub.s32 %s26, %s33
    %s313 = sor.u32 %s311, %s312
    %p314 = scmp.eq.s32.totalorder %s313, 0
    %s316 = sadd.s32 %s315, 1
    %s317 = scalar_select %p314, %s315, %s316
    %p320 = pneg %p314
    %p321 = scmp.eq.s32.totalorder %s18, 1
    %p322 = por %p320, %p321
    %p323 = scmp.ne.s32.totalorder %s315, %s318
    %p324 = scmp.eq.s32.totalorder %s18, 0
    %p325 = por %p323, %p324
    %p326 = scmp.ne.s32.totalorder %s315, %s318
    %p327 = scmp.eq.s32.totalorder %s23, 1
    %p328 = por %p326, %p327
    %p329 = scmp.ne.s32.totalorder %s318, %s319
    %p330 = scmp.eq.s32.totalorder %s23, 0
    %p331 = por %p329, %p330
    %p332 = scmp.ne.s32.totalorder %s318, %s319
    %p333 = scmp.eq.s32.totalorder %s24, 1
    %p334 = por %p332, %p333
    %p336 = scmp.ne.s32.totalorder %s319, %s335
    %p337 = scmp.eq.s32.totalorder %s24, 0
    %p338 = por %p336, %p337
    %p339 = scmp.le.s32.totalorder 1, %s18
    %p340 = scmp.lt.s32.totalorder %s18, 3
    %p341 = pnand %p339, %p340
    %p342 = pneg %p341
    // Predicated region
    $region9: #{zoom_cat.1} parent=5 // pred_check
      _
    $region10: #{zoom_cat.1} parent=5 // pred_check_branch
      %344 = sbr.rel (%p341) target = $region12
    $region11: #{zoom_cat.1} parent=5 // pred_region
      %s345 = ssub.s32 %s18, 1
      // Predicated region
      $region13: #{zoom_cat.1} parent=11 // pred_check
        %p346 = pneg %p135
      $region14: #{zoom_cat.1} parent=11 // pred_check_branch
        %348 = sbr.rel (%p346) target = $region16
      $region15: #{zoom_cat.1} parent=11 // pred_region
        _
      $region16: #{zoom_cat.1} parent=11 // pred_fallthru
        _
      // Predicated region
      $region17: #{zoom_cat.1} parent=11 // pred_check
        %p349 = pneg %p156
      $region18: #{zoom_cat.1} parent=11 // pred_check_branch
        %351 = sbr.rel (%p349) target = $region20
      $region19: #{zoom_cat.1} parent=11 // pred_region
        _
      $region20: #{zoom_cat.1} parent=11 // pred_fallthru
        _
      // Predicated region
      $region21: #{zoom_cat.1} parent=11 // pred_check
        %p352 = pneg %p177
      $region22: #{zoom_cat.1} parent=11 // pred_check_branch
        %354 = sbr.rel (%p352) target = $region24
      $region23: #{zoom_cat.1} parent=11 // pred_region
        _
      $region24: #{zoom_cat.1} parent=11 // pred_fallthru
        _
      // Predicated region
      $region25: #{zoom_cat.1} parent=11 // pred_check
        %p355 = pneg %p198
      $region26: #{zoom_cat.1} parent=11 // pred_check_branch
        %357 = sbr.rel (%p355) target = $region28
      $region27: #{zoom_cat.1} parent=11 // pred_region
        _
      $region28: #{zoom_cat.1} parent=11 // pred_fallthru
        _
      // Predicated region
      $region29: #{zoom_cat.1} parent=11 // pred_check
        %p358 = pneg %p219
      $region30: #{zoom_cat.1} parent=11 // pred_check_branch
        %360 = sbr.rel (%p358) target = $region32
      $region31: #{zoom_cat.1} parent=11 // pred_region
        _
      $region32: #{zoom_cat.1} parent=11 // pred_fallthru
        _
      // Predicated region
      $region33: #{zoom_cat.1} parent=11 // pred_check
        %p361 = pneg %p240
      $region34: #{zoom_cat.1} parent=11 // pred_check_branch
        %363 = sbr.rel (%p361) target = $region36
      $region35: #{zoom_cat.1} parent=11 // pred_region
        _
      $region36: #{zoom_cat.1} parent=11 // pred_fallthru
        _
      // Predicated region
      $region37: #{zoom_cat.1} parent=11 // pred_check
        %p364 = pneg %p261
      $region38: #{zoom_cat.1} parent=11 // pred_check_branch
        %366 = sbr.rel (%p364) target = $region40
      $region39: #{zoom_cat.1} parent=11 // pred_region
        _
      $region40: #{zoom_cat.1} parent=11 // pred_fallthru
        _
      // Predicated region
      $region41: #{zoom_cat.1} parent=11 // pred_check
        %p367 = pneg %p282
      $region42: #{zoom_cat.1} parent=11 // pred_check_branch
        %369 = sbr.rel (%p367) target = $region44
      $region43: #{zoom_cat.1} parent=11 // pred_region
        _
      $region44: #{zoom_cat.1} parent=11 // pred_fallthru
        _
      // Predicated region
      $region45: #{zoom_cat.1} parent=11 // pred_check
        %p370 = pneg %p303
      $region46: #{zoom_cat.1} parent=11 // pred_check_branch
        %372 = sbr.rel (%p370) target = $region48
      $region47: #{zoom_cat.1} parent=11 // pred_region
        _
      $region48: #{zoom_cat.1} parent=11 // pred_fallthru
        _
    $region12: #{zoom_cat.1} parent=5 // pred_fallthru
      _
    %p373 = scmp.lt.s32.totalorder %s18, 2
    // Predicated region
    $region49: #{zoom_cat.1} parent=5 // pred_check
      %p374 = pneg %p373
    $region50: #{zoom_cat.1} parent=5 // pred_check_branch
      %376 = sbr.rel (%p374) target = $region52
    $region51: #{zoom_cat.1} parent=5 // pred_region
      // Predicated region
      $region53: #{zoom_cat.1} parent=51 // pred_check
        %p377 = pneg %p52
      $region54: #{zoom_cat.1} parent=51 // pred_check_branch
        %379 = sbr.rel (%p377) target = $region56
      $region55: #{zoom_cat.1} parent=51 // pred_region
        %s380 = smul.u32 16, %s26
        %p381 = scmp.lt.s32.totalorder %s25, 1
        %s382 = scalar_select %p381, %s25, 1
        %p383 = scmp.lt.s32.totalorder %s380, 15
        %s384 = scalar_select %p383, %s380, 15
        %s385 = smul.addr %s382, 16
        %s386 = sadd.s32 %s384, %s385
        %s387 = smul.addr %s386, 8
        %s388 = scalar_lea.vmem %s0, %s387
        %s389 = smul.u32 16, %s26
      $region56: #{zoom_cat.1} parent=51 // pred_fallthru
        _
      // Predicated region
      $region57: #{zoom_cat.1} parent=51 // pred_check
        %p390 = pneg %p80
      $region58: #{zoom_cat.1} parent=51 // pred_check_branch
        %392 = sbr.rel (%p390) target = $region60
      $region59: #{zoom_cat.1} parent=51 // pred_region
        %p393 = scmp.lt.s32.totalorder %s25, 1
        %s394 = scalar_select %p393, %s25, 1
        %p395 = scmp.lt.s32.totalorder %s26, 0
        %s396 = scalar_select %p395, %s26, 0
        %s397 = smul.addr %s396, 2
        %s398 = smul.addr %s394, 2
        %s399 = sadd.s32 %s397, %s398
        %s400 = smul.addr %s399, 4
        %s401 = scalar_lea.vmem %s1, %s400
      $region60: #{zoom_cat.1} parent=51 // pred_fallthru
        _
      // Predicated region
      $region61: #{zoom_cat.1} parent=51 // pred_check
        %p402 = pneg %p108
      $region62: #{zoom_cat.1} parent=51 // pred_check_branch
        %404 = sbr.rel (%p402) target = $region64
      $region63: #{zoom_cat.1} parent=51 // pred_region
        %s405 = smul.u32 4, %s26
        %p406 = scmp.lt.s32.totalorder %s25, 1
        %s407 = scalar_select %p406, %s25, 1
        %p408 = scmp.lt.s32.totalorder %s405, 3
        %s409 = scalar_select %p408, %s405, 3
        %s410 = smul.addr %s407, 4
        %s411 = sadd.s32 %s409, %s410
        %s412 = smul.addr %s411, 8
        %s413 = scalar_lea.vmem %s2, %s412
        %s414 = smul.u32 4, %s26
      $region64: #{zoom_cat.1} parent=51 // pred_fallthru
        _
    $region52: #{zoom_cat.1} parent=5 // pred_fallthru
      _
    %p415 = scmp.le.s32.totalorder 1, %s18
    %p416 = scmp.lt.s32.totalorder %s18, 3
    %p417 = pnand %p415, %p416
    %p418 = pneg %p417
    // Predicated region
    $region65: #{zoom_cat.1} parent=5 // pred_check
      _
    $region66: #{zoom_cat.1} parent=5 // pred_check_branch
      %420 = sbr.rel (%p417) target = $region68
    $region67: #{zoom_cat.1} parent=5 // pred_region
      %s421 = ssub.s32 %s18, 1
      %s422 = smul.u32 16, %s28
      %p423 = scmp.lt.s32.totalorder %s27, 1
      %s424 = scalar_select %p423, %s27, 1
      %p425 = scmp.lt.s32.totalorder %s422, 15
      %s426 = scalar_select %p425, %s422, 15
      %s427 = smul.addr %s424, 16
      %s428 = sadd.s32 %s426, %s427
      %s429 = smul.addr %s428, 8
      %s430 = scalar_lea.vmem %s0, %s429
      %p431 = pneg %p58
      %p432 = pneg %p55
      %p433 = scmp.lt.s32.totalorder %s27, 1
      %s434 = scalar_select %p433, %s27, 1
      %p435 = scmp.lt.s32.totalorder %s28, 0
      %s436 = scalar_select %p435, %s28, 0
      %s437 = smul.addr %s436, 2
      %s438 = smul.addr %s434, 2
      %s439 = sadd.s32 %s437, %s438
      %s440 = smul.addr %s439, 4
      %s441 = scalar_lea.vmem %s1, %s440
      %p442 = pneg %p86
      %p443 = pneg %p83
      %s444 = smul.u32 4, %s28
      %p445 = scmp.lt.s32.totalorder %s27, 1
      %s446 = scalar_select %p445, %s27, 1
      %p447 = scmp.lt.s32.totalorder %s444, 3
      %s448 = scalar_select %p447, %s444, 3
      %s449 = smul.addr %s446, 4
      %s450 = sadd.s32 %s448, %s449
      %s451 = smul.addr %s450, 8
      %s452 = scalar_lea.vmem %s2, %s451
      %p453 = pneg %p114
      %p454 = pneg %p111
      %p455 = pneg %p135
      %p456 = pneg %p132
      %p457 = pneg %p156
      %p458 = pneg %p153
      %p459 = pneg %p177
      %p460 = pneg %p174
      %p461 = pneg %p198
      %p462 = pneg %p195
      %p463 = pneg %p219
      %p464 = pneg %p216
      %p465 = pneg %p240
      %p466 = pneg %p237
      %p467 = pneg %p261
      %p468 = pneg %p258
      %p469 = pneg %p282
      %p470 = pneg %p279
      %p471 = pneg %p303
      %p472 = pneg %p300
      %p473 = pneg %p331
      %p474 = pneg %p328
      %p475 = scmp.lt.s32.totalorder %s27, 1
      %s476 = scalar_select %p475, %s27, 1
      %p477 = scmp.lt.s32.totalorder %s28, 0
      %s478 = scalar_select %p477, %s28, 0
      %s479 = smul.addr %s478, 2
      %s480 = smul.addr %s476, 6
      %s481 = sadd.s32 %s479, %s480
      %s482 = smul.addr %s481, 4
      %s483 = scalar_lea.vmem %s12, %s482
      %s484 = smul.u32 16, %s28
      %p485 = scmp.lt.s32.totalorder %s27, 1
      %s486 = scalar_select %p485, %s27, 1
      %p487 = scmp.lt.s32.totalorder %s484, 15
      %s488 = scalar_select %p487, %s484, 15
      %s489 = smul.addr %s486, 16
      %s490 = sadd.s32 %s488, %s489
      %s491 = smul.addr %s490, 8
      %s492 = scalar_lea.vmem %s0, %s491
      %s493 = smul.u32 16, %s28
      %p494 = scmp.lt.s32.totalorder %s27, 1
      %s495 = scalar_select %p494, %s27, 1
      %p496 = scmp.lt.s32.totalorder %s28, 0
      %s497 = scalar_select %p496, %s28, 0
      %s498 = smul.addr %s497, 2
      %s499 = smul.addr %s495, 2
      %s500 = sadd.s32 %s498, %s499
      %s501 = smul.addr %s500, 4
      %s502 = scalar_lea.vmem %s1, %s501
      %s503 = smul.u32 4, %s28
      %p504 = scmp.lt.s32.totalorder %s27, 1
      %s505 = scalar_select %p504, %s27, 1
      %p506 = scmp.lt.s32.totalorder %s503, 3
      %s507 = scalar_select %p506, %s503, 3
      %s508 = smul.addr %s505, 4
      %s509 = sadd.s32 %s507, %s508
      %s510 = smul.addr %s509, 8
      %s511 = scalar_lea.vmem %s2, %s510
      %s512 = smul.u32 4, %s28
      %p513 = scmp.lt.s32.totalorder %s27, 1
      %s514 = scalar_select %p513, %s27, 1
      %p515 = scmp.lt.s32.totalorder %s28, 0
      %s516 = scalar_select %p515, %s28, 0
      %s517 = smul.addr %s516, 2
      %s518 = smul.addr %s514, 6
      %s519 = sadd.s32 %s517, %s518
      %s520 = smul.addr %s519, 4
      %s521 = scalar_lea.vmem %s12, %s520
      %v522 = vld [vmem:[%s492] sm:$0xff]
      %v523 = vld [vmem:[%s492 + $0x8] sm:$0xff]
      %v524 = vld [vmem:[%s492 + $0x10] sm:$0xff]
      %v525 = vld [vmem:[%s492 + $0x18] sm:$0xff]
      %v526 = vld [vmem:[%s492 + $0x20] sm:$0xff]
      %v527 = vld [vmem:[%s492 + $0x28] sm:$0xff]
      %v528 = vld [vmem:[%s492 + $0x30] sm:$0xff]
      %v529 = vld [vmem:[%s492 + $0x38] sm:$0xff]
      %v530 = vld [vmem:[%s492 + $0x40] sm:$0xff]
      %v531 = vld [vmem:[%s492 + $0x48] sm:$0xff]
      %v532 = vld [vmem:[%s492 + $0x50] sm:$0xff]
      %v533 = vld [vmem:[%s492 + $0x58] sm:$0xff]
      %v534 = vld [vmem:[%s492 + $0x60] sm:$0xff]
      %v535 = vld [vmem:[%s492 + $0x68] sm:$0xff]
      %v536 = vld [vmem:[%s492 + $0x70] sm:$0xff]
      %v537 = vld [vmem:[%s492 + $0x78] sm:$0xff]
      %v538 = vld [vmem:[%s3] sm:$0xff]
      %v539 = vld [vmem:[%s3 + $0x8] sm:$0xff]
      %v540 = vld [vmem:[%s3 + $0x10] sm:$0xff]
      %v541 = vld [vmem:[%s3 + $0x18] sm:$0xff]
      %vm542 = vcmask 261120
      %v544 = vsel %vm542, %v522, 0
      %v547 = vsel %vm542, %v523, 0
      %v550 = vsel %vm542, %v524, 0
      %v553 = vsel %vm542, %v525, 0
      %v556 = vsel %vm542, %v526, 0
      %v559 = vsel %vm542, %v527, 0
      %v562 = vsel %vm542, %v528, 0
      %v565 = vsel %vm542, %v529, 0
      %v568 = vsel %vm542, %v530, 0
      %v571 = vsel %vm542, %v531, 0
      %v574 = vsel %vm542, %v532, 0
      %v577 = vsel %vm542, %v533, 0
      %v580 = vsel %vm542, %v534, 0
      %v583 = vsel %vm542, %v535, 0
      %v586 = vsel %vm542, %v536, 0
      %v589 = vsel %vm542, %v537, 0
      %591 = vmatprep.subr.mxu0 0.0
      %592 = vmatpush1.msra.mxu0 0.0
      %593 = vmatprep.subr.mxu0 0.0
      %594 = vmatpush1.msra.mxu0 0.0
      %595 = vmatprep.subr.mxu0 0.0
      %596 = vmatpush1.msra.mxu0 0.0
      %597 = vmatprep.subr.mxu0 0.0
      %598 = vmatpush1.msra.mxu0 0.0
      %599 = vmatprep.subr.mxu0 0.0
      %600 = vmatpush1.msra.mxu0 0.0
      %601 = vmatprep.subr.mxu0 0.0
      %602 = vmatpush1.msra.mxu0 0.0
      %603 = vmatprep.subr.mxu0 0.0
      %604 = vmatpush1.msra.mxu0 0.0
      %605 = vmatprep.subr.mxu0 0.0
      %606 = vmatpush1.msra.mxu0 0.0
      %607 = vmatprep.subr.mxu0 0.0
      %608 = vmatpush1.msra.mxu0 0.0
      %609 = vmatprep.subr.mxu0 0.0
      %610 = vmatpush1.msra.mxu0 0.0
      %611 = vmatprep.subr.mxu0 0.0
      %612 = vmatpush1.msra.mxu0 0.0
      %613 = vmatprep.subr.mxu0 0.0
      %614 = vmatpush1.msra.mxu0 0.0
      %615 = vmatprep.subr.mxu0 0.0
      %616 = vmatpush1.msra.mxu0 %v541
      %617 = vmatprep.subr.mxu0 0.0
      %618 = vmatpush1.msra.mxu0 %v540
      %619 = vmatprep.subr.mxu0 0.0
      %620 = vmatpush1.msra.mxu0 %v539
      %621 = vmatprep.subr.mxu0 0.0
      %622 = vmatpush1.msra.mxu0 %v538
      %623 = vmatprep.subr.mxu0 0.0
      %624 = vmatpush2.msra.mxu0 0.0
      %625 = vmatprep.subr.mxu0 0.0
      %626 = vmatpush2.msra.mxu0 0.0
      %627 = vmatprep.subr.mxu0 0.0
      %628 = vmatpush2.msra.mxu0 0.0
      %629 = vmatprep.subr.mxu0 0.0
      %630 = vmatpush2.msra.mxu0 0.0
      %631 = vmatprep.subr.mxu0 0.0
      %632 = vmatpush2.msra.mxu0 0.0
      %633 = vmatprep.subr.mxu0 0.0
      %634 = vmatpush2.msra.mxu0 0.0
      %635 = vmatprep.subr.mxu0 0.0
      %636 = vmatpush2.msra.mxu0 0.0
      %637 = vmatprep.subr.mxu0 0.0
      %638 = vmatpush2.msra.mxu0 0.0
      %639 = vmatprep.subr.mxu0 0.0
      %640 = vmatpush2.msra.mxu0 0.0
      %641 = vmatprep.subr.mxu0 0.0
      %642 = vmatpush2.msra.mxu0 0.0
      %643 = vmatprep.subr.mxu0 0.0
      %644 = vmatpush2.msra.mxu0 0.0
      %645 = vmatprep.subr.mxu0 0.0
      %646 = vmatpush2.msra.mxu0 0.0
      %647 = vmatprep.subr.mxu0 0.0
      %648 = vmatpush2.msra.mxu0 0.0
      %649 = vmatprep.subr.mxu0 0.0
      %650 = vmatpush2.msra.mxu0 0.0
      %651 = vmatprep.subr.mxu0 0.0
      %652 = vmatpush2.msra.mxu0 0.0
      %653 = vmatprep.subr.mxu0 0.0
      %654 = vmatpush2.msra.mxu0 0.0
      %655 = vmatprep.mubr.f32.mxu0 0.0
      %656 = vmatmul.mubr.f32.gmra.mxu0 %v544
      %v657 = vpop.f32.mrf.mxu0
      %v658 = vadd.f32 0.0, %v657
      %v659 = vpop.f32.mrf.mxu0
      %660 = vmatprep.mubr.f32.mxu0 0.0
      %661 = vmatmul.mubr.f32.gmra.mxu0 %v547
      %v662 = vpop.f32.mrf.mxu0
      %v663 = vadd.f32 0.0, %v662
      %v664 = vpop.f32.mrf.mxu0
      %665 = vmatprep.mubr.f32.mxu0 0.0
      %666 = vmatmul.mubr.f32.gmra.mxu0 %v550
      %v667 = vpop.f32.mrf.mxu0
      %v668 = vadd.f32 0.0, %v667
      %v669 = vpop.f32.mrf.mxu0
      %670 = vmatprep.mubr.f32.mxu0 0.0
      %671 = vmatmul.mubr.f32.gmra.mxu0 %v553
      %v672 = vpop.f32.mrf.mxu0
      %v673 = vadd.f32 0.0, %v672
      %v674 = vpop.f32.mrf.mxu0
      %675 = vmatprep.mubr.f32.mxu0 0.0
      %676 = vmatmul.mubr.f32.gmra.mxu0 %v556
      %v677 = vpop.f32.mrf.mxu0
      %v678 = vadd.f32 0.0, %v677
      %v679 = vpop.f32.mrf.mxu0
      %680 = vmatprep.mubr.f32.mxu0 0.0
      %681 = vmatmul.mubr.f32.gmra.mxu0 %v559
      %v682 = vpop.f32.mrf.mxu0
      %v683 = vadd.f32 0.0, %v682
      %v684 = vpop.f32.mrf.mxu0
      %685 = vmatprep.mubr.f32.mxu0 0.0
      %686 = vmatmul.mubr.f32.gmra.mxu0 %v562
      %v687 = vpop.f32.mrf.mxu0
      %v688 = vadd.f32 0.0, %v687
      %v689 = vpop.f32.mrf.mxu0
      %690 = vmatprep.mubr.f32.mxu0 0.0
      %691 = vmatmul.mubr.f32.gmra.mxu0 %v565
      %v692 = vpop.f32.mrf.mxu0
      %v693 = vadd.f32 0.0, %v692
      %v694 = vpop.f32.mrf.mxu0
      %695 = vmatprep.mubr.f32.mxu0 0.0
      %696 = vmatmul.mubr.f32.gmra.mxu0 %v568
      %v697 = vpop.f32.mrf.mxu0
      %v698 = vadd.f32 0.0, %v697
      %v699 = vpop.f32.mrf.mxu0
      %700 = vmatprep.mubr.f32.mxu0 0.0
      %701 = vmatmul.mubr.f32.gmra.mxu0 %v571
      %v702 = vpop.f32.mrf.mxu0
      %v703 = vadd.f32 0.0, %v702
      %v704 = vpop.f32.mrf.mxu0
      %705 = vmatprep.mubr.f32.mxu0 0.0
      %706 = vmatmul.mubr.f32.gmra.mxu0 %v574
      %v707 = vpop.f32.mrf.mxu0
      %v708 = vadd.f32 0.0, %v707
      %v709 = vpop.f32.mrf.mxu0
      %710 = vmatprep.mubr.f32.mxu0 0.0
      %711 = vmatmul.mubr.f32.gmra.mxu0 %v577
      %v712 = vpop.f32.mrf.mxu0
      %v713 = vadd.f32 0.0, %v712
      %v714 = vpop.f32.mrf.mxu0
      %715 = vmatprep.mubr.f32.mxu0 0.0
      %716 = vmatmul.mubr.f32.gmra.mxu0 %v580
      %v717 = vpop.f32.mrf.mxu0
      %v718 = vadd.f32 0.0, %v717
      %v719 = vpop.f32.mrf.mxu0
      %720 = vmatprep.mubr.f32.mxu0 0.0
      %721 = vmatmul.mubr.f32.gmra.mxu0 %v583
      %v722 = vpop.f32.mrf.mxu0
      %v723 = vadd.f32 0.0, %v722
      %v724 = vpop.f32.mrf.mxu0
      %725 = vmatprep.mubr.f32.mxu0 0.0
      %726 = vmatmul.mubr.f32.gmra.mxu0 %v586
      %v727 = vpop.f32.mrf.mxu0
      %v728 = vadd.f32 0.0, %v727
      %v729 = vpop.f32.mrf.mxu0
      %730 = vmatprep.mubr.f32.mxu0 0.0
      %731 = vmatmul.mubr.f32.gmra.mxu0 %v589
      %v732 = vpop.f32.mrf.mxu0
      %v733 = vadd.f32 0.0, %v732
      %v734 = vpop.f32.mrf.mxu0
      %735 = vdwg.mxu0
      %v736 = vld [vmem:[%s5] sm:$0x1]
      %v738 = vlaneseq
      %v739 = vshrl.u32 %v738, 7
      %v740 = vsub.s32 0, %v739
      %v741 = vrot.slane %v736, %v740
      %v743 = vmul.f32 %v658, %v741
      %v744 = vmul.f32 %v663, %v741
      %v745 = vmul.f32 %v668, %v741
      %v746 = vmul.f32 %v673, %v741
      %v747 = vmul.f32 %v678, %v741
      %v748 = vmul.f32 %v683, %v741
      %v749 = vmul.f32 %v688, %v741
      %v750 = vmul.f32 %v693, %v741
      %v751 = vmul.f32 %v698, %v741
      %v752 = vmul.f32 %v703, %v741
      %v753 = vmul.f32 %v708, %v741
      %v754 = vmul.f32 %v713, %v741
      %v755 = vmul.f32 %v718, %v741
      %v756 = vmul.f32 %v723, %v741
      %v757 = vmul.f32 %v728, %v741
      %v758 = vmul.f32 %v733, %v741
      %v759 = vld [vmem:[%s4] sm:$0x1]
      %v761 = vlaneseq
      %v762 = vshrl.u32 %v761, 7
      %v763 = vsub.s32 0, %v762
      %v764 = vrot.slane %v759, %v763
      %765 = vrot.lane.b32.xlu0 %v764, 16
      %v766 = vpop.permute.xlu0 %765
      %v768 = vadd.f32 %v658, %v766
      %v769 = vadd.f32 %v663, %v766
      %v770 = vadd.f32 %v668, %v766
      %v771 = vadd.f32 %v673, %v766
      %v772 = vadd.f32 %v678, %v766
      %v773 = vadd.f32 %v683, %v766
      %v774 = vadd.f32 %v688, %v766
      %v775 = vadd.f32 %v693, %v766
      %v776 = vadd.f32 %v698, %v766
      %v777 = vadd.f32 %v703, %v766
      %v778 = vadd.f32 %v708, %v766
      %v779 = vadd.f32 %v713, %v766
      %v780 = vadd.f32 %v718, %v766
      %v781 = vadd.f32 %v723, %v766
      %v782 = vadd.f32 %v728, %v766
      %v783 = vadd.f32 %v733, %v766
      %800 = vrot.lane.b32.xlu0 %v768, 112
      %v801 = vpop.permute.xlu0 %800
      %802 = vrot.lane.b32.xlu0 %v769, 112
      %v803 = vpop.permute.xlu0 %802
      %804 = vrot.lane.b32.xlu0 %v770, 112
      %v805 = vpop.permute.xlu0 %804
      %806 = vrot.lane.b32.xlu0 %v771, 112
      %v807 = vpop.permute.xlu0 %806
      %808 = vrot.lane.b32.xlu0 %v772, 112
      %v809 = vpop.permute.xlu0 %808
      %810 = vrot.lane.b32.xlu0 %v773, 112
      %v811 = vpop.permute.xlu0 %810
      %812 = vrot.lane.b32.xlu0 %v774, 112
      %v813 = vpop.permute.xlu0 %812
      %814 = vrot.lane.b32.xlu0 %v775, 112
      %v815 = vpop.permute.xlu0 %814
      %816 = vrot.lane.b32.xlu0 %v776, 112
      %v817 = vpop.permute.xlu0 %816
      %818 = vrot.lane.b32.xlu0 %v777, 112
      %v819 = vpop.permute.xlu0 %818
      %820 = vrot.lane.b32.xlu0 %v778, 112
      %v821 = vpop.permute.xlu0 %820
      %822 = vrot.lane.b32.xlu0 %v779, 112
      %v823 = vpop.permute.xlu0 %822
      %824 = vrot.lane.b32.xlu0 %v780, 112
      %v825 = vpop.permute.xlu0 %824
      %826 = vrot.lane.b32.xlu0 %v781, 112
      %v827 = vpop.permute.xlu0 %826
      %828 = vrot.lane.b32.xlu0 %v782, 112
      %v829 = vpop.permute.xlu0 %828
      %830 = vrot.lane.b32.xlu0 %v783, 112
      %v831 = vpop.permute.xlu0 %830
      %v848 = vmax.f32 %v768, %v801
      %v849 = vmax.f32 %v769, %v803
      %v850 = vmax.f32 %v770, %v805
      %v851 = vmax.f32 %v771, %v807
      %v852 = vmax.f32 %v772, %v809
      %v853 = vmax.f32 %v773, %v811
      %v854 = vmax.f32 %v774, %v813
      %v855 = vmax.f32 %v775, %v815
      %v856 = vmax.f32 %v776, %v817
      %v857 = vmax.f32 %v777, %v819
      %v858 = vmax.f32 %v778, %v821
      %v859 = vmax.f32 %v779, %v823
      %v860 = vmax.f32 %v780, %v825
      %v861 = vmax.f32 %v781, %v827
      %v862 = vmax.f32 %v782, %v829
      %v863 = vmax.f32 %v783, %v831
      %v864 = vld [vmem:[%s511] sm:$0xff]
      %v865 = vld [vmem:[%s511 + $0x8] sm:$0xff]
      %v866 = vld [vmem:[%s511 + $0x10] sm:$0xff]
      %v867 = vld [vmem:[%s511 + $0x18] sm:$0xff]
      %v868 = vld [vmem:[%s6] sm:$0xff]
      %vm869 = vcmask 64512
      %v871 = vsel %vm869, %v864, 0
      %v874 = vsel %vm869, %v865, 0
      %v877 = vsel %vm869, %v866, 0
      %v880 = vsel %vm869, %v867, 0
      %882 = vmatprep.subr.mxu0 0.0
      %883 = vmatpush1.msra.mxu0 0.0
      %884 = vmatprep.subr.mxu0 0.0
      %885 = vmatpush1.msra.mxu0 0.0
      %886 = vmatprep.subr.mxu0 0.0
      %887 = vmatpush1.msra.mxu0 0.0
      %888 = vmatprep.subr.mxu0 0.0
      %889 = vmatpush1.msra.mxu0 0.0
      %890 = vmatprep.subr.mxu0 0.0
      %891 = vmatpush1.msra.mxu0 0.0
      %892 = vmatprep.subr.mxu0 0.0
      %893 = vmatpush1.msra.mxu0 0.0
      %894 = vmatprep.subr.mxu0 0.0
      %895 = vmatpush1.msra.mxu0 0.0
      %896 = vmatprep.subr.mxu0 0.0
      %897 = vmatpush1.msra.mxu0 0.0
      %898 = vmatprep.subr.mxu0 0.0
      %899 = vmatpush1.msra.mxu0 0.0
      %900 = vmatprep.subr.mxu0 0.0
      %901 = vmatpush1.msra.mxu0 0.0
      %902 = vmatprep.subr.mxu0 0.0
      %903 = vmatpush1.msra.mxu0 0.0
      %904 = vmatprep.subr.mxu0 0.0
      %905 = vmatpush1.msra.mxu0 0.0
      %906 = vmatprep.subr.mxu0 0.0
      %907 = vmatpush1.msra.mxu0 0.0
      %908 = vmatprep.subr.mxu0 0.0
      %909 = vmatpush1.msra.mxu0 0.0
      %910 = vmatprep.subr.mxu0 0.0
      %911 = vmatpush1.msra.mxu0 0.0
      %912 = vmatprep.subr.mxu0 0.0
      %913 = vmatpush1.msra.mxu0 %v868
      %914 = vmatprep.subr.mxu0 0.0
      %915 = vmatpush2.msra.mxu0 0.0
      %916 = vmatprep.subr.mxu0 0.0
      %917 = vmatpush2.msra.mxu0 0.0
      %918 = vmatprep.subr.mxu0 0.0
      %919 = vmatpush2.msra.mxu0 0.0
      %920 = vmatprep.subr.mxu0 0.0
      %921 = vmatpush2.msra.mxu0 0.0
      %922 = vmatprep.subr.mxu0 0.0
      %923 = vmatpush2.msra.mxu0 0.0
      %924 = vmatprep.subr.mxu0 0.0
      %925 = vmatpush2.msra.mxu0 0.0
      %926 = vmatprep.subr.mxu0 0.0
      %927 = vmatpush2.msra.mxu0 0.0
      %928 = vmatprep.subr.mxu0 0.0
      %929 = vmatpush2.msra.mxu0 0.0
      %930 = vmatprep.subr.mxu0 0.0
      %931 = vmatpush2.msra.mxu0 0.0
      %932 = vmatprep.subr.mxu0 0.0
      %933 = vmatpush2.msra.mxu0 0.0
      %934 = vmatprep.subr.mxu0 0.0
      %935 = vmatpush2.msra.mxu0 0.0
      %936 = vmatprep.subr.mxu0 0.0
      %937 = vmatpush2.msra.mxu0 0.0
      %938 = vmatprep.subr.mxu0 0.0
      %939 = vmatpush2.msra.mxu0 0.0
      %940 = vmatprep.subr.mxu0 0.0
      %941 = vmatpush2.msra.mxu0 0.0
      %942 = vmatprep.subr.mxu0 0.0
      %943 = vmatpush2.msra.mxu0 0.0
      %944 = vmatprep.subr.mxu0 0.0
      %945 = vmatpush2.msra.mxu0 0.0
      %946 = vmatprep.mubr.f32.mxu0 0.0
      %947 = vmatmul.mubr.f32.gmra.mxu0 %v871
      %v948 = vpop.f32.mrf.mxu0
      %v949 = vadd.f32 0.0, %v948
      %v950 = vpop.f32.mrf.mxu0
      %951 = vmatprep.mubr.f32.mxu0 0.0
      %952 = vmatmul.mubr.f32.gmra.mxu0 %v874
      %v953 = vpop.f32.mrf.mxu0
      %v954 = vadd.f32 0.0, %v953
      %v955 = vpop.f32.mrf.mxu0
      %956 = vmatprep.mubr.f32.mxu0 0.0
      %957 = vmatmul.mubr.f32.gmra.mxu0 %v877
      %v958 = vpop.f32.mrf.mxu0
      %v959 = vadd.f32 0.0, %v958
      %v960 = vpop.f32.mrf.mxu0
      %961 = vmatprep.mubr.f32.mxu0 0.0
      %962 = vmatmul.mubr.f32.gmra.mxu0 %v880
      %v963 = vpop.f32.mrf.mxu0
      %v964 = vadd.f32 0.0, %v963
      %v965 = vpop.f32.mrf.mxu0
      %966 = vdwg.mxu0
      %v967 = vld [vmem:[%s7] sm:$0xff]
      %v968 = vld [vmem:[%s7 + $0x8] sm:$0xff]
      %v969 = vld [vmem:[%s7 + $0x10] sm:$0xff]
      %v970 = vld [vmem:[%s7 + $0x18] sm:$0xff]
      %v971 = vld [vmem:[%s7 + $0x20] sm:$0xff]
      %v972 = vld [vmem:[%s7 + $0x28] sm:$0xff]
      %v973 = vld [vmem:[%s7 + $0x30] sm:$0xff]
      %v974 = vld [vmem:[%s7 + $0x38] sm:$0xff]
      %v976 = vsel %vm542, %v967, 0
      %v979 = vsel %vm542, %v968, 0
      %981 = vmatprep.subr.mxu0 0.0
      %982 = vmatpush1.msra.mxu0 0.0
      %983 = vmatprep.subr.mxu0 0.0
      %984 = vmatpush1.msra.mxu0 0.0
      %985 = vmatprep.subr.mxu0 0.0
      %986 = vmatpush1.msra.mxu0 0.0
      %987 = vmatprep.subr.mxu0 0.0
      %988 = vmatpush1.msra.mxu0 0.0
      %989 = vmatprep.subr.mxu0 0.0
      %990 = vmatpush1.msra.mxu0 0.0
      %991 = vmatprep.subr.mxu0 0.0
      %992 = vmatpush1.msra.mxu0 0.0
      %993 = vmatprep.subr.mxu0 0.0
      %994 = vmatpush1.msra.mxu0 0.0
      %995 = vmatprep.subr.mxu0 0.0
      %996 = vmatpush1.msra.mxu0 0.0
      %997 = vmatprep.subr.mxu0 0.0
      %998 = vmatpush1.msra.mxu0 0.0
      %999 = vmatprep.subr.mxu0 0.0
      %1000 = vmatpush1.msra.mxu0 0.0
      %1001 = vmatprep.subr.mxu0 0.0
      %1002 = vmatpush1.msra.mxu0 0.0
      %1003 = vmatprep.subr.mxu0 0.0
      %1004 = vmatpush1.msra.mxu0 0.0
      %1005 = vmatprep.subr.mxu0 0.0
      %1006 = vmatpush1.msra.mxu0 %v746
      %1007 = vmatprep.subr.mxu0 0.0
      %1008 = vmatpush1.msra.mxu0 %v745
      %1009 = vmatprep.subr.mxu0 0.0
      %1010 = vmatpush1.msra.mxu0 %v744
      %1011 = vmatprep.subr.mxu0 0.0
      %1012 = vmatpush1.msra.mxu0 %v743
      %1013 = vmatprep.subr.mxu0 0.0
      %1014 = vmatpush2.msra.mxu0 0.0
      %1015 = vmatprep.subr.mxu0 0.0
      %1016 = vmatpush2.msra.mxu0 0.0
      %1017 = vmatprep.subr.mxu0 0.0
      %1018 = vmatpush2.msra.mxu0 0.0
      %1019 = vmatprep.subr.mxu0 0.0
      %1020 = vmatpush2.msra.mxu0 0.0
      %1021 = vmatprep.subr.mxu0 0.0
      %1022 = vmatpush2.msra.mxu0 0.0
      %1023 = vmatprep.subr.mxu0 0.0
      %1024 = vmatpush2.msra.mxu0 0.0
      %1025 = vmatprep.subr.mxu0 0.0
      %1026 = vmatpush2.msra.mxu0 0.0
      %1027 = vmatprep.subr.mxu0 0.0
      %1028 = vmatpush2.msra.mxu0 0.0
      %1029 = vmatprep.subr.mxu0 0.0
      %1030 = vmatpush2.msra.mxu0 0.0
      %1031 = vmatprep.subr.mxu0 0.0
      %1032 = vmatpush2.msra.mxu0 0.0
      %1033 = vmatprep.subr.mxu0 0.0
      %1034 = vmatpush2.msra.mxu0 0.0
      %1035 = vmatprep.subr.mxu0 0.0
      %1036 = vmatpush2.msra.mxu0 0.0
      %1037 = vmatprep.subr.mxu0 0.0
      %1038 = vmatpush2.msra.mxu0 0.0
      %1039 = vmatprep.subr.mxu0 0.0
      %1040 = vmatpush2.msra.mxu0 0.0
      %1041 = vmatprep.subr.mxu0 0.0
      %1042 = vmatpush2.msra.mxu0 0.0
      %1043 = vmatprep.subr.mxu0 0.0
      %1044 = vmatpush2.msra.mxu0 0.0
      %1045 = vmatprep.mubr.f32.mxu0 0.0
      %1046 = vmatmul.mubr.f32.gmra.mxu0 %v976
      %v1047 = vpop.f32.mrf.mxu0
      %v1048 = vadd.f32 0.0, %v1047
      %v1049 = vpop.f32.mrf.mxu0
      %1050 = vmatprep.mubr.f32.mxu0 0.0
      %1051 = vmatmul.mubr.f32.gmra.mxu0 %v979
      %v1052 = vpop.f32.mrf.mxu0
      %v1053 = vadd.f32 0.0, %v1052
      %v1054 = vpop.f32.mrf.mxu0
      %1055 = vdwg.mxu0
      %v1057 = vsel %vm542, %v969, 0
      %v1060 = vsel %vm542, %v970, 0
      %1062 = vmatprep.subr.mxu0 0.0
      %1063 = vmatpush1.msra.mxu0 0.0
      %1064 = vmatprep.subr.mxu0 0.0
      %1065 = vmatpush1.msra.mxu0 0.0
      %1066 = vmatprep.subr.mxu0 0.0
      %1067 = vmatpush1.msra.mxu0 0.0
      %1068 = vmatprep.subr.mxu0 0.0
      %1069 = vmatpush1.msra.mxu0 0.0
      %1070 = vmatprep.subr.mxu0 0.0
      %1071 = vmatpush1.msra.mxu0 0.0
      %1072 = vmatprep.subr.mxu0 0.0
      %1073 = vmatpush1.msra.mxu0 0.0
      %1074 = vmatprep.subr.mxu0 0.0
      %1075 = vmatpush1.msra.mxu0 0.0
      %1076 = vmatprep.subr.mxu0 0.0
      %1077 = vmatpush1.msra.mxu0 0.0
      %1078 = vmatprep.subr.mxu0 0.0
      %1079 = vmatpush1.msra.mxu0 0.0
      %1080 = vmatprep.subr.mxu0 0.0
      %1081 = vmatpush1.msra.mxu0 0.0
      %1082 = vmatprep.subr.mxu0 0.0
      %1083 = vmatpush1.msra.mxu0 0.0
      %1084 = vmatprep.subr.mxu0 0.0
      %1085 = vmatpush1.msra.mxu0 0.0
      %1086 = vmatprep.subr.mxu0 0.0
      %1087 = vmatpush1.msra.mxu0 %v750
      %1088 = vmatprep.subr.mxu0 0.0
      %1089 = vmatpush1.msra.mxu0 %v749
      %1090 = vmatprep.subr.mxu0 0.0
      %1091 = vmatpush1.msra.mxu0 %v748
      %1092 = vmatprep.subr.mxu0 0.0
      %1093 = vmatpush1.msra.mxu0 %v747
      %1094 = vmatprep.subr.mxu0 0.0
      %1095 = vmatpush2.msra.mxu0 0.0
      %1096 = vmatprep.subr.mxu0 0.0
      %1097 = vmatpush2.msra.mxu0 0.0
      %1098 = vmatprep.subr.mxu0 0.0
      %1099 = vmatpush2.msra.mxu0 0.0
      %1100 = vmatprep.subr.mxu0 0.0
      %1101 = vmatpush2.msra.mxu0 0.0
      %1102 = vmatprep.subr.mxu0 0.0
      %1103 = vmatpush2.msra.mxu0 0.0
      %1104 = vmatprep.subr.mxu0 0.0
      %1105 = vmatpush2.msra.mxu0 0.0
      %1106 = vmatprep.subr.mxu0 0.0
      %1107 = vmatpush2.msra.mxu0 0.0
      %1108 = vmatprep.subr.mxu0 0.0
      %1109 = vmatpush2.msra.mxu0 0.0
      %1110 = vmatprep.subr.mxu0 0.0
      %1111 = vmatpush2.msra.mxu0 0.0
      %1112 = vmatprep.subr.mxu0 0.0
      %1113 = vmatpush2.msra.mxu0 0.0
      %1114 = vmatprep.subr.mxu0 0.0
      %1115 = vmatpush2.msra.mxu0 0.0
      %1116 = vmatprep.subr.mxu0 0.0
      %1117 = vmatpush2.msra.mxu0 0.0
      %1118 = vmatprep.subr.mxu0 0.0
      %1119 = vmatpush2.msra.mxu0 0.0
      %1120 = vmatprep.subr.mxu0 0.0
      %1121 = vmatpush2.msra.mxu0 0.0
      %1122 = vmatprep.subr.mxu0 0.0
      %1123 = vmatpush2.msra.mxu0 0.0
      %1124 = vmatprep.subr.mxu0 0.0
      %1125 = vmatpush2.msra.mxu0 0.0
      %1126 = vmatprep.mubr.f32.mxu0 0.0
      %1127 = vmatmul.mubr.f32.gmra.mxu0 %v1057
      %v1128 = vpop.f32.mrf.mxu0
      %v1129 = vadd.f32 0.0, %v1128
      %v1130 = vpop.f32.mrf.mxu0
      %1131 = vmatprep.mubr.f32.mxu0 0.0
      %1132 = vmatmul.mubr.f32.gmra.mxu0 %v1060
      %v1133 = vpop.f32.mrf.mxu0
      %v1134 = vadd.f32 0.0, %v1133
      %v1135 = vpop.f32.mrf.mxu0
      %1136 = vdwg.mxu0
      %v1138 = vsel %vm542, %v971, 0
      %v1141 = vsel %vm542, %v972, 0
      %1143 = vmatprep.subr.mxu0 0.0
      %1144 = vmatpush1.msra.mxu0 0.0
      %1145 = vmatprep.subr.mxu0 0.0
      %1146 = vmatpush1.msra.mxu0 0.0
      %1147 = vmatprep.subr.mxu0 0.0
      %1148 = vmatpush1.msra.mxu0 0.0
      %1149 = vmatprep.subr.mxu0 0.0
      %1150 = vmatpush1.msra.mxu0 0.0
      %1151 = vmatprep.subr.mxu0 0.0
      %1152 = vmatpush1.msra.mxu0 0.0
      %1153 = vmatprep.subr.mxu0 0.0
      %1154 = vmatpush1.msra.mxu0 0.0
      %1155 = vmatprep.subr.mxu0 0.0
      %1156 = vmatpush1.msra.mxu0 0.0
      %1157 = vmatprep.subr.mxu0 0.0
      %1158 = vmatpush1.msra.mxu0 0.0
      %1159 = vmatprep.subr.mxu0 0.0
      %1160 = vmatpush1.msra.mxu0 0.0
      %1161 = vmatprep.subr.mxu0 0.0
      %1162 = vmatpush1.msra.mxu0 0.0
      %1163 = vmatprep.subr.mxu0 0.0
      %1164 = vmatpush1.msra.mxu0 0.0
      %1165 = vmatprep.subr.mxu0 0.0
      %1166 = vmatpush1.msra.mxu0 0.0
      %1167 = vmatprep.subr.mxu0 0.0
      %1168 = vmatpush1.msra.mxu0 %v754
      %1169 = vmatprep.subr.mxu0 0.0
      %1170 = vmatpush1.msra.mxu0 %v753
      %1171 = vmatprep.subr.mxu0 0.0
      %1172 = vmatpush1.msra.mxu0 %v752
      %1173 = vmatprep.subr.mxu0 0.0
      %1174 = vmatpush1.msra.mxu0 %v751
      %1175 = vmatprep.subr.mxu0 0.0
      %1176 = vmatpush2.msra.mxu0 0.0
      %1177 = vmatprep.subr.mxu0 0.0
      %1178 = vmatpush2.msra.mxu0 0.0
      %1179 = vmatprep.subr.mxu0 0.0
      %1180 = vmatpush2.msra.mxu0 0.0
      %1181 = vmatprep.subr.mxu0 0.0
      %1182 = vmatpush2.msra.mxu0 0.0
      %1183 = vmatprep.subr.mxu0 0.0
      %1184 = vmatpush2.msra.mxu0 0.0
      %1185 = vmatprep.subr.mxu0 0.0
      %1186 = vmatpush2.msra.mxu0 0.0
      %1187 = vmatprep.subr.mxu0 0.0
      %1188 = vmatpush2.msra.mxu0 0.0
      %1189 = vmatprep.subr.mxu0 0.0
      %1190 = vmatpush2.msra.mxu0 0.0
      %1191 = vmatprep.subr.mxu0 0.0
      %1192 = vmatpush2.msra.mxu0 0.0
      %1193 = vmatprep.subr.mxu0 0.0
      %1194 = vmatpush2.msra.mxu0 0.0
      %1195 = vmatprep.subr.mxu0 0.0
      %1196 = vmatpush2.msra.mxu0 0.0
      %1197 = vmatprep.subr.mxu0 0.0
      %1198 = vmatpush2.msra.mxu0 0.0
      %1199 = vmatprep.subr.mxu0 0.0
      %1200 = vmatpush2.msra.mxu0 0.0
      %1201 = vmatprep.subr.mxu0 0.0
      %1202 = vmatpush2.msra.mxu0 0.0
      %1203 = vmatprep.subr.mxu0 0.0
      %1204 = vmatpush2.msra.mxu0 0.0
      %1205 = vmatprep.subr.mxu0 0.0
      %1206 = vmatpush2.msra.mxu0 0.0
      %1207 = vmatprep.mubr.f32.mxu0 0.0
      %1208 = vmatmul.mubr.f32.gmra.mxu0 %v1138
      %v1209 = vpop.f32.mrf.mxu0
      %v1210 = vadd.f32 0.0, %v1209
      %v1211 = vpop.f32.mrf.mxu0
      %1212 = vmatprep.mubr.f32.mxu0 0.0
      %1213 = vmatmul.mubr.f32.gmra.mxu0 %v1141
      %v1214 = vpop.f32.mrf.mxu0
      %v1215 = vadd.f32 0.0, %v1214
      %v1216 = vpop.f32.mrf.mxu0
      %1217 = vdwg.mxu0
      %v1219 = vsel %vm542, %v973, 0
      %v1222 = vsel %vm542, %v974, 0
      %1224 = vmatprep.subr.mxu0 0.0
      %1225 = vmatpush1.msra.mxu0 0.0
      %1226 = vmatprep.subr.mxu0 0.0
      %1227 = vmatpush1.msra.mxu0 0.0
      %1228 = vmatprep.subr.mxu0 0.0
      %1229 = vmatpush1.msra.mxu0 0.0
      %1230 = vmatprep.subr.mxu0 0.0
      %1231 = vmatpush1.msra.mxu0 0.0
      %1232 = vmatprep.subr.mxu0 0.0
      %1233 = vmatpush1.msra.mxu0 0.0
      %1234 = vmatprep.subr.mxu0 0.0
      %1235 = vmatpush1.msra.mxu0 0.0
      %1236 = vmatprep.subr.mxu0 0.0
      %1237 = vmatpush1.msra.mxu0 0.0
      %1238 = vmatprep.subr.mxu0 0.0
      %1239 = vmatpush1.msra.mxu0 0.0
      %1240 = vmatprep.subr.mxu0 0.0
      %1241 = vmatpush1.msra.mxu0 0.0
      %1242 = vmatprep.subr.mxu0 0.0
      %1243 = vmatpush1.msra.mxu0 0.0
      %1244 = vmatprep.subr.mxu0 0.0
      %1245 = vmatpush1.msra.mxu0 0.0
      %1246 = vmatprep.subr.mxu0 0.0
      %1247 = vmatpush1.msra.mxu0 0.0
      %1248 = vmatprep.subr.mxu0 0.0
      %1249 = vmatpush1.msra.mxu0 %v758
      %1250 = vmatprep.subr.mxu0 0.0
      %1251 = vmatpush1.msra.mxu0 %v757
      %1252 = vmatprep.subr.mxu0 0.0
      %1253 = vmatpush1.msra.mxu0 %v756
      %1254 = vmatprep.subr.mxu0 0.0
      %1255 = vmatpush1.msra.mxu0 %v755
      %1256 = vmatprep.subr.mxu0 0.0
      %1257 = vmatpush2.msra.mxu0 0.0
      %1258 = vmatprep.subr.mxu0 0.0
      %1259 = vmatpush2.msra.mxu0 0.0
      %1260 = vmatprep.subr.mxu0 0.0
      %1261 = vmatpush2.msra.mxu0 0.0
      %1262 = vmatprep.subr.mxu0 0.0
      %1263 = vmatpush2.msra.mxu0 0.0
      %1264 = vmatprep.subr.mxu0 0.0
      %1265 = vmatpush2.msra.mxu0 0.0
      %1266 = vmatprep.subr.mxu0 0.0
      %1267 = vmatpush2.msra.mxu0 0.0
      %1268 = vmatprep.subr.mxu0 0.0
      %1269 = vmatpush2.msra.mxu0 0.0
      %1270 = vmatprep.subr.mxu0 0.0
      %1271 = vmatpush2.msra.mxu0 0.0
      %1272 = vmatprep.subr.mxu0 0.0
      %1273 = vmatpush2.msra.mxu0 0.0
      %1274 = vmatprep.subr.mxu0 0.0
      %1275 = vmatpush2.msra.mxu0 0.0
      %1276 = vmatprep.subr.mxu0 0.0
      %1277 = vmatpush2.msra.mxu0 0.0
      %1278 = vmatprep.subr.mxu0 0.0
      %1279 = vmatpush2.msra.mxu0 0.0
      %1280 = vmatprep.subr.mxu0 0.0
      %1281 = vmatpush2.msra.mxu0 0.0
      %1282 = vmatprep.subr.mxu0 0.0
      %1283 = vmatpush2.msra.mxu0 0.0
      %1284 = vmatprep.subr.mxu0 0.0
      %1285 = vmatpush2.msra.mxu0 0.0
      %1286 = vmatprep.subr.mxu0 0.0
      %1287 = vmatpush2.msra.mxu0 0.0
      %1288 = vmatprep.mubr.f32.mxu0 0.0
      %1289 = vmatmul.mubr.f32.gmra.mxu0 %v1219
      %v1290 = vpop.f32.mrf.mxu0
      %v1291 = vadd.f32 0.0, %v1290
      %v1292 = vpop.f32.mrf.mxu0
      %1293 = vmatprep.mubr.f32.mxu0 0.0
      %1294 = vmatmul.mubr.f32.gmra.mxu0 %v1222
      %v1295 = vpop.f32.mrf.mxu0
      %v1296 = vadd.f32 0.0, %v1295
      %v1297 = vpop.f32.mrf.mxu0
      %1298 = vdwg.mxu0
      %v1299 = vld [vmem:[%s10] sm:$0xff]
      %v1300 = vld [vmem:[%s10 + $0x8] sm:$0xff]
      %1302 = vset.pattern.permute.xlu0 0
      %1303 = vperm.xlu0 %1302, %v1299
      %v1304 = vpop.permute.xlu0 %1303
      %1307 = vset.pattern.permute.xlu0 0
      %1308 = vperm.xlu0 %1307, %v1300
      %v1309 = vpop.permute.xlu0 %1308
      %v1311 = vmul.f32 %v1048, %v1304
      %v1312 = vmul.f32 %v1053, %v1309
      %v1313 = vmul.f32 %v1129, %v1304
      %v1314 = vmul.f32 %v1134, %v1309
      %v1315 = vmul.f32 %v1210, %v1304
      %v1316 = vmul.f32 %v1215, %v1309
      %v1317 = vmul.f32 %v1291, %v1304
      %v1318 = vmul.f32 %v1296, %v1309
      %v1319 = vld [vmem:[%s8] sm:$0xff]
      %v1320 = vld [vmem:[%s8 + $0x8] sm:$0xff]
      %v1321 = vld [vmem:[%s8 + $0x10] sm:$0xff]
      %v1322 = vld [vmem:[%s8 + $0x18] sm:$0xff]
      %v1323 = vld [vmem:[%s8 + $0x20] sm:$0xff]
      %v1324 = vld [vmem:[%s8 + $0x28] sm:$0xff]
      %v1325 = vld [vmem:[%s8 + $0x30] sm:$0xff]
      %v1326 = vld [vmem:[%s8 + $0x38] sm:$0xff]
      %v1327 = vld [vmem:[%s8 + $0x40] sm:$0xff]
      %v1328 = vld [vmem:[%s8 + $0x48] sm:$0xff]
      %v1329 = vld [vmem:[%s8 + $0x50] sm:$0xff]
      %v1330 = vld [vmem:[%s8 + $0x58] sm:$0xff]
      %v1331 = vld [vmem:[%s8 + $0x60] sm:$0xff]
      %v1332 = vld [vmem:[%s8 + $0x68] sm:$0xff]
      %v1333 = vld [vmem:[%s8 + $0x70] sm:$0xff]
      %v1334 = vld [vmem:[%s8 + $0x78] sm:$0xff]
      %v1335 = vld [vmem:[%s9] sm:$0xff]
      %v1336 = vld [vmem:[%s9 + $0x8] sm:$0xff]
      %v1337 = vld [vmem:[%s9 + $0x10] sm:$0xff]
      %v1338 = vld [vmem:[%s9 + $0x18] sm:$0xff]
      %1340 = vset.pattern.permute.xlu0 0
      %1341 = vperm.xlu0 %1340, %v1335
      %v1342 = vpop.permute.xlu0 %1341
      %1345 = vset.pattern.permute.xlu0 0
      %1346 = vperm.xlu0 %1345, %v1336
      %v1347 = vpop.permute.xlu0 %1346
      %1350 = vset.pattern.permute.xlu0 0
      %1351 = vperm.xlu0 %1350, %v1337
      %v1352 = vpop.permute.xlu0 %1351
      %1355 = vset.pattern.permute.xlu0 0
      %1356 = vperm.xlu0 %1355, %v1338
      %v1357 = vpop.permute.xlu0 %1356
      %1363 = vrot.lane.b32.xlu0 %v848, 112
      %v1364 = vpop.permute.xlu0 %1363
      %1365 = vrot.lane.b32.xlu0 %v849, 112
      %v1366 = vpop.permute.xlu0 %1365
      %1367 = vrot.lane.b32.xlu0 %v850, 112
      %v1368 = vpop.permute.xlu0 %1367
      %1369 = vrot.lane.b32.xlu0 %v851, 112
      %v1370 = vpop.permute.xlu0 %1369
      %v1376 = vsel %vm542, %v1319, 0
      %v1379 = vsel %vm542, %v1320, 0
      %v1382 = vsel %vm542, %v1321, 0
      %v1385 = vsel %vm542, %v1322, 0
      %1387 = vmatprep.subr.mxu0 0.0
      %1388 = vmatpush1.msra.mxu0 0.0
      %1389 = vmatprep.subr.mxu0 0.0
      %1390 = vmatpush1.msra.mxu0 0.0
      %1391 = vmatprep.subr.mxu0 0.0
      %1392 = vmatpush1.msra.mxu0 0.0
      %1393 = vmatprep.subr.mxu0 0.0
      %1394 = vmatpush1.msra.mxu0 0.0
      %1395 = vmatprep.subr.mxu0 0.0
      %1396 = vmatpush1.msra.mxu0 0.0
      %1397 = vmatprep.subr.mxu0 0.0
      %1398 = vmatpush1.msra.mxu0 0.0
      %1399 = vmatprep.subr.mxu0 0.0
      %1400 = vmatpush1.msra.mxu0 0.0
      %1401 = vmatprep.subr.mxu0 0.0
      %1402 = vmatpush1.msra.mxu0 0.0
      %1403 = vmatprep.subr.mxu0 0.0
      %1404 = vmatpush1.msra.mxu0 0.0
      %1405 = vmatprep.subr.mxu0 0.0
      %1406 = vmatpush1.msra.mxu0 0.0
      %1407 = vmatprep.subr.mxu0 0.0
      %1408 = vmatpush1.msra.mxu0 0.0
      %1409 = vmatprep.subr.mxu0 0.0
      %1410 = vmatpush1.msra.mxu0 0.0
      %1411 = vmatprep.subr.mxu0 0.0
      %1412 = vmatpush1.msra.mxu0 %v1370
      %1413 = vmatprep.subr.mxu0 0.0
      %1414 = vmatpush1.msra.mxu0 %v1368
      %1415 = vmatprep.subr.mxu0 0.0
      %1416 = vmatpush1.msra.mxu0 %v1366
      %1417 = vmatprep.subr.mxu0 0.0
      %1418 = vmatpush1.msra.mxu0 %v1364
      %1419 = vmatprep.subr.mxu0 0.0
      %1420 = vmatpush2.msra.mxu0 0.0
      %1421 = vmatprep.subr.mxu0 0.0
      %1422 = vmatpush2.msra.mxu0 0.0
      %1423 = vmatprep.subr.mxu0 0.0
      %1424 = vmatpush2.msra.mxu0 0.0
      %1425 = vmatprep.subr.mxu0 0.0
      %1426 = vmatpush2.msra.mxu0 0.0
      %1427 = vmatprep.subr.mxu0 0.0
      %1428 = vmatpush2.msra.mxu0 0.0
      %1429 = vmatprep.subr.mxu0 0.0
      %1430 = vmatpush2.msra.mxu0 0.0
      %1431 = vmatprep.subr.mxu0 0.0
      %1432 = vmatpush2.msra.mxu0 0.0
      %1433 = vmatprep.subr.mxu0 0.0
      %1434 = vmatpush2.msra.mxu0 0.0
      %1435 = vmatprep.subr.mxu0 0.0
      %1436 = vmatpush2.msra.mxu0 0.0
      %1437 = vmatprep.subr.mxu0 0.0
      %1438 = vmatpush2.msra.mxu0 0.0
      %1439 = vmatprep.subr.mxu0 0.0
      %1440 = vmatpush2.msra.mxu0 0.0
      %1441 = vmatprep.subr.mxu0 0.0
      %1442 = vmatpush2.msra.mxu0 0.0
      %1443 = vmatprep.subr.mxu0 0.0
      %1444 = vmatpush2.msra.mxu0 0.0
      %1445 = vmatprep.subr.mxu0 0.0
      %1446 = vmatpush2.msra.mxu0 0.0
      %1447 = vmatprep.subr.mxu0 0.0
      %1448 = vmatpush2.msra.mxu0 0.0
      %1449 = vmatprep.subr.mxu0 0.0
      %1450 = vmatpush2.msra.mxu0 0.0
      %1451 = vmatprep.mubr.f32.mxu0 0.0
      %1452 = vmatmul.mubr.f32.gmra.mxu0 %v1376
      %v1453 = vpop.f32.mrf.mxu0
      %v1454 = vadd.f32 %v1342, %v1453
      %v1455 = vpop.f32.mrf.mxu0
      %1456 = vmatprep.mubr.f32.mxu0 0.0
      %1457 = vmatmul.mubr.f32.gmra.mxu0 %v1379
      %v1458 = vpop.f32.mrf.mxu0
      %v1459 = vadd.f32 %v1347, %v1458
      %v1460 = vpop.f32.mrf.mxu0
      %1461 = vmatprep.mubr.f32.mxu0 0.0
      %1462 = vmatmul.mubr.f32.gmra.mxu0 %v1382
      %v1463 = vpop.f32.mrf.mxu0
      %v1464 = vadd.f32 %v1352, %v1463
      %v1465 = vpop.f32.mrf.mxu0
      %1466 = vmatprep.mubr.f32.mxu0 0.0
      %1467 = vmatmul.mubr.f32.gmra.mxu0 %v1385
      %v1468 = vpop.f32.mrf.mxu0
      %v1469 = vadd.f32 %v1357, %v1468
      %v1470 = vpop.f32.mrf.mxu0
      %1471 = vdwg.mxu0
      %1476 = vrot.lane.b32.xlu0 %v852, 112
      %v1477 = vpop.permute.xlu0 %1476
      %1478 = vrot.lane.b32.xlu0 %v853, 112
      %v1479 = vpop.permute.xlu0 %1478
      %1480 = vrot.lane.b32.xlu0 %v854, 112
      %v1481 = vpop.permute.xlu0 %1480
      %1482 = vrot.lane.b32.xlu0 %v855, 112
      %v1483 = vpop.permute.xlu0 %1482
      %v1489 = vsel %vm542, %v1323, 0
      %v1492 = vsel %vm542, %v1324, 0
      %v1495 = vsel %vm542, %v1325, 0
      %v1498 = vsel %vm542, %v1326, 0
      %1500 = vmatprep.subr.mxu0 0.0
      %1501 = vmatpush1.msra.mxu0 0.0
      %1502 = vmatprep.subr.mxu0 0.0
      %1503 = vmatpush1.msra.mxu0 0.0
      %1504 = vmatprep.subr.mxu0 0.0
      %1505 = vmatpush1.msra.mxu0 0.0
      %1506 = vmatprep.subr.mxu0 0.0
      %1507 = vmatpush1.msra.mxu0 0.0
      %1508 = vmatprep.subr.mxu0 0.0
      %1509 = vmatpush1.msra.mxu0 0.0
      %1510 = vmatprep.subr.mxu0 0.0
      %1511 = vmatpush1.msra.mxu0 0.0
      %1512 = vmatprep.subr.mxu0 0.0
      %1513 = vmatpush1.msra.mxu0 0.0
      %1514 = vmatprep.subr.mxu0 0.0
      %1515 = vmatpush1.msra.mxu0 0.0
      %1516 = vmatprep.subr.mxu0 0.0
      %1517 = vmatpush1.msra.mxu0 0.0
      %1518 = vmatprep.subr.mxu0 0.0
      %1519 = vmatpush1.msra.mxu0 0.0
      %1520 = vmatprep.subr.mxu0 0.0
      %1521 = vmatpush1.msra.mxu0 0.0
      %1522 = vmatprep.subr.mxu0 0.0
      %1523 = vmatpush1.msra.mxu0 0.0
      %1524 = vmatprep.subr.mxu0 0.0
      %1525 = vmatpush1.msra.mxu0 %v1483
      %1526 = vmatprep.subr.mxu0 0.0
      %1527 = vmatpush1.msra.mxu0 %v1481
      %1528 = vmatprep.subr.mxu0 0.0
      %1529 = vmatpush1.msra.mxu0 %v1479
      %1530 = vmatprep.subr.mxu0 0.0
      %1531 = vmatpush1.msra.mxu0 %v1477
      %1532 = vmatprep.subr.mxu0 0.0
      %1533 = vmatpush2.msra.mxu0 0.0
      %1534 = vmatprep.subr.mxu0 0.0
      %1535 = vmatpush2.msra.mxu0 0.0
      %1536 = vmatprep.subr.mxu0 0.0
      %1537 = vmatpush2.msra.mxu0 0.0
      %1538 = vmatprep.subr.mxu0 0.0
      %1539 = vmatpush2.msra.mxu0 0.0
      %1540 = vmatprep.subr.mxu0 0.0
      %1541 = vmatpush2.msra.mxu0 0.0
      %1542 = vmatprep.subr.mxu0 0.0
      %1543 = vmatpush2.msra.mxu0 0.0
      %1544 = vmatprep.subr.mxu0 0.0
      %1545 = vmatpush2.msra.mxu0 0.0
      %1546 = vmatprep.subr.mxu0 0.0
      %1547 = vmatpush2.msra.mxu0 0.0
      %1548 = vmatprep.subr.mxu0 0.0
      %1549 = vmatpush2.msra.mxu0 0.0
      %1550 = vmatprep.subr.mxu0 0.0
      %1551 = vmatpush2.msra.mxu0 0.0
      %1552 = vmatprep.subr.mxu0 0.0
      %1553 = vmatpush2.msra.mxu0 0.0
      %1554 = vmatprep.subr.mxu0 0.0
      %1555 = vmatpush2.msra.mxu0 0.0
      %1556 = vmatprep.subr.mxu0 0.0
      %1557 = vmatpush2.msra.mxu0 0.0
      %1558 = vmatprep.subr.mxu0 0.0
      %1559 = vmatpush2.msra.mxu0 0.0
      %1560 = vmatprep.subr.mxu0 0.0
      %1561 = vmatpush2.msra.mxu0 0.0
      %1562 = vmatprep.subr.mxu0 0.0
      %1563 = vmatpush2.msra.mxu0 0.0
      %1564 = vmatprep.mubr.f32.mxu0 0.0
      %1565 = vmatmul.mubr.f32.gmra.mxu0 %v1489
      %v1566 = vpop.f32.mrf.mxu0
      %v1567 = vadd.f32 %v1342, %v1566
      %v1568 = vpop.f32.mrf.mxu0
      %1569 = vmatprep.mubr.f32.mxu0 0.0
      %1570 = vmatmul.mubr.f32.gmra.mxu0 %v1492
      %v1571 = vpop.f32.mrf.mxu0
      %v1572 = vadd.f32 %v1347, %v1571
      %v1573 = vpop.f32.mrf.mxu0
      %1574 = vmatprep.mubr.f32.mxu0 0.0
      %1575 = vmatmul.mubr.f32.gmra.mxu0 %v1495
      %v1576 = vpop.f32.mrf.mxu0
      %v1577 = vadd.f32 %v1352, %v1576
      %v1578 = vpop.f32.mrf.mxu0
      %1579 = vmatprep.mubr.f32.mxu0 0.0
      %1580 = vmatmul.mubr.f32.gmra.mxu0 %v1498
      %v1581 = vpop.f32.mrf.mxu0
      %v1582 = vadd.f32 %v1357, %v1581
      %v1583 = vpop.f32.mrf.mxu0
      %1584 = vdwg.mxu0
      %1589 = vrot.lane.b32.xlu0 %v856, 112
      %v1590 = vpop.permute.xlu0 %1589
      %1591 = vrot.lane.b32.xlu0 %v857, 112
      %v1592 = vpop.permute.xlu0 %1591
      %1593 = vrot.lane.b32.xlu0 %v858, 112
      %v1594 = vpop.permute.xlu0 %1593
      %1595 = vrot.lane.b32.xlu0 %v859, 112
      %v1596 = vpop.permute.xlu0 %1595
      %v1602 = vsel %vm542, %v1327, 0
      %v1605 = vsel %vm542, %v1328, 0
      %v1608 = vsel %vm542, %v1329, 0
      %v1611 = vsel %vm542, %v1330, 0
      %1613 = vmatprep.subr.mxu0 0.0
      %1614 = vmatpush1.msra.mxu0 0.0
      %1615 = vmatprep.subr.mxu0 0.0
      %1616 = vmatpush1.msra.mxu0 0.0
      %1617 = vmatprep.subr.mxu0 0.0
      %1618 = vmatpush1.msra.mxu0 0.0
      %1619 = vmatprep.subr.mxu0 0.0
      %1620 = vmatpush1.msra.mxu0 0.0
      %1621 = vmatprep.subr.mxu0 0.0
      %1622 = vmatpush1.msra.mxu0 0.0
      %1623 = vmatprep.subr.mxu0 0.0
      %1624 = vmatpush1.msra.mxu0 0.0
      %1625 = vmatprep.subr.mxu0 0.0
      %1626 = vmatpush1.msra.mxu0 0.0
      %1627 = vmatprep.subr.mxu0 0.0
      %1628 = vmatpush1.msra.mxu0 0.0
      %1629 = vmatprep.subr.mxu0 0.0
      %1630 = vmatpush1.msra.mxu0 0.0
      %1631 = vmatprep.subr.mxu0 0.0
      %1632 = vmatpush1.msra.mxu0 0.0
      %1633 = vmatprep.subr.mxu0 0.0
      %1634 = vmatpush1.msra.mxu0 0.0
      %1635 = vmatprep.subr.mxu0 0.0
      %1636 = vmatpush1.msra.mxu0 0.0
      %1637 = vmatprep.subr.mxu0 0.0
      %1638 = vmatpush1.msra.mxu0 %v1596
      %1639 = vmatprep.subr.mxu0 0.0
      %1640 = vmatpush1.msra.mxu0 %v1594
      %1641 = vmatprep.subr.mxu0 0.0
      %1642 = vmatpush1.msra.mxu0 %v1592
      %1643 = vmatprep.subr.mxu0 0.0
      %1644 = vmatpush1.msra.mxu0 %v1590
      %1645 = vmatprep.subr.mxu0 0.0
      %1646 = vmatpush2.msra.mxu0 0.0
      %1647 = vmatprep.subr.mxu0 0.0
      %1648 = vmatpush2.msra.mxu0 0.0
      %1649 = vmatprep.subr.mxu0 0.0
      %1650 = vmatpush2.msra.mxu0 0.0
      %1651 = vmatprep.subr.mxu0 0.0
      %1652 = vmatpush2.msra.mxu0 0.0
      %1653 = vmatprep.subr.mxu0 0.0
      %1654 = vmatpush2.msra.mxu0 0.0
      %1655 = vmatprep.subr.mxu0 0.0
      %1656 = vmatpush2.msra.mxu0 0.0
      %1657 = vmatprep.subr.mxu0 0.0
      %1658 = vmatpush2.msra.mxu0 0.0
      %1659 = vmatprep.subr.mxu0 0.0
      %1660 = vmatpush2.msra.mxu0 0.0
      %1661 = vmatprep.subr.mxu0 0.0
      %1662 = vmatpush2.msra.mxu0 0.0
      %1663 = vmatprep.subr.mxu0 0.0
      %1664 = vmatpush2.msra.mxu0 0.0
      %1665 = vmatprep.subr.mxu0 0.0
      %1666 = vmatpush2.msra.mxu0 0.0
      %1667 = vmatprep.subr.mxu0 0.0
      %1668 = vmatpush2.msra.mxu0 0.0
      %1669 = vmatprep.subr.mxu0 0.0
      %1670 = vmatpush2.msra.mxu0 0.0
      %1671 = vmatprep.subr.mxu0 0.0
      %1672 = vmatpush2.msra.mxu0 0.0
      %1673 = vmatprep.subr.mxu0 0.0
      %1674 = vmatpush2.msra.mxu0 0.0
      %1675 = vmatprep.subr.mxu0 0.0
      %1676 = vmatpush2.msra.mxu0 0.0
      %1677 = vmatprep.mubr.f32.mxu0 0.0
      %1678 = vmatmul.mubr.f32.gmra.mxu0 %v1602
      %v1679 = vpop.f32.mrf.mxu0
      %v1680 = vadd.f32 %v1342, %v1679
      %v1681 = vpop.f32.mrf.mxu0
      %1682 = vmatprep.mubr.f32.mxu0 0.0
      %1683 = vmatmul.mubr.f32.gmra.mxu0 %v1605
      %v1684 = vpop.f32.mrf.mxu0
      %v1685 = vadd.f32 %v1347, %v1684
      %v1686 = vpop.f32.mrf.mxu0
      %1687 = vmatprep.mubr.f32.mxu0 0.0
      %1688 = vmatmul.mubr.f32.gmra.mxu0 %v1608
      %v1689 = vpop.f32.mrf.mxu0
      %v1690 = vadd.f32 %v1352, %v1689
      %v1691 = vpop.f32.mrf.mxu0
      %1692 = vmatprep.mubr.f32.mxu0 0.0
      %1693 = vmatmul.mubr.f32.gmra.mxu0 %v1611
      %v1694 = vpop.f32.mrf.mxu0
      %v1695 = vadd.f32 %v1357, %v1694
      %v1696 = vpop.f32.mrf.mxu0
      %1697 = vdwg.mxu0
      %1702 = vrot.lane.b32.xlu0 %v860, 112
      %v1703 = vpop.permute.xlu0 %1702
      %1704 = vrot.lane.b32.xlu0 %v861, 112
      %v1705 = vpop.permute.xlu0 %1704
      %1706 = vrot.lane.b32.xlu0 %v862, 112
      %v1707 = vpop.permute.xlu0 %1706
      %1708 = vrot.lane.b32.xlu0 %v863, 112
      %v1709 = vpop.permute.xlu0 %1708
      %v1715 = vsel %vm542, %v1331, 0
      %v1718 = vsel %vm542, %v1332, 0
      %v1721 = vsel %vm542, %v1333, 0
      %v1724 = vsel %vm542, %v1334, 0
      %1726 = vmatprep.subr.mxu0 0.0
      %1727 = vmatpush1.msra.mxu0 0.0
      %1728 = vmatprep.subr.mxu0 0.0
      %1729 = vmatpush1.msra.mxu0 0.0
      %1730 = vmatprep.subr.mxu0 0.0
      %1731 = vmatpush1.msra.mxu0 0.0
      %1732 = vmatprep.subr.mxu0 0.0
      %1733 = vmatpush1.msra.mxu0 0.0
      %1734 = vmatprep.subr.mxu0 0.0
      %1735 = vmatpush1.msra.mxu0 0.0
      %1736 = vmatprep.subr.mxu0 0.0
      %1737 = vmatpush1.msra.mxu0 0.0
      %1738 = vmatprep.subr.mxu0 0.0
      %1739 = vmatpush1.msra.mxu0 0.0
      %1740 = vmatprep.subr.mxu0 0.0
      %1741 = vmatpush1.msra.mxu0 0.0
      %1742 = vmatprep.subr.mxu0 0.0
      %1743 = vmatpush1.msra.mxu0 0.0
      %1744 = vmatprep.subr.mxu0 0.0
      %1745 = vmatpush1.msra.mxu0 0.0
      %1746 = vmatprep.subr.mxu0 0.0
      %1747 = vmatpush1.msra.mxu0 0.0
      %1748 = vmatprep.subr.mxu0 0.0
      %1749 = vmatpush1.msra.mxu0 0.0
      %1750 = vmatprep.subr.mxu0 0.0
      %1751 = vmatpush1.msra.mxu0 %v1709
      %1752 = vmatprep.subr.mxu0 0.0
      %1753 = vmatpush1.msra.mxu0 %v1707
      %1754 = vmatprep.subr.mxu0 0.0
      %1755 = vmatpush1.msra.mxu0 %v1705
      %1756 = vmatprep.subr.mxu0 0.0
      %1757 = vmatpush1.msra.mxu0 %v1703
      %1758 = vmatprep.subr.mxu0 0.0
      %1759 = vmatpush2.msra.mxu0 0.0
      %1760 = vmatprep.subr.mxu0 0.0
      %1761 = vmatpush2.msra.mxu0 0.0
      %1762 = vmatprep.subr.mxu0 0.0
      %1763 = vmatpush2.msra.mxu0 0.0
      %1764 = vmatprep.subr.mxu0 0.0
      %1765 = vmatpush2.msra.mxu0 0.0
      %1766 = vmatprep.subr.mxu0 0.0
      %1767 = vmatpush2.msra.mxu0 0.0
      %1768 = vmatprep.subr.mxu0 0.0
      %1769 = vmatpush2.msra.mxu0 0.0
      %1770 = vmatprep.subr.mxu0 0.0
      %1771 = vmatpush2.msra.mxu0 0.0
      %1772 = vmatprep.subr.mxu0 0.0
      %1773 = vmatpush2.msra.mxu0 0.0
      %1774 = vmatprep.subr.mxu0 0.0
      %1775 = vmatpush2.msra.mxu0 0.0
      %1776 = vmatprep.subr.mxu0 0.0
      %1777 = vmatpush2.msra.mxu0 0.0
      %1778 = vmatprep.subr.mxu0 0.0
      %1779 = vmatpush2.msra.mxu0 0.0
      %1780 = vmatprep.subr.mxu0 0.0
      %1781 = vmatpush2.msra.mxu0 0.0
      %1782 = vmatprep.subr.mxu0 0.0
      %1783 = vmatpush2.msra.mxu0 0.0
      %1784 = vmatprep.subr.mxu0 0.0
      %1785 = vmatpush2.msra.mxu0 0.0
      %1786 = vmatprep.subr.mxu0 0.0
      %1787 = vmatpush2.msra.mxu0 0.0
      %1788 = vmatprep.subr.mxu0 0.0
      %1789 = vmatpush2.msra.mxu0 0.0
      %1790 = vmatprep.mubr.f32.mxu0 0.0
      %1791 = vmatmul.mubr.f32.gmra.mxu0 %v1715
      %v1792 = vpop.f32.mrf.mxu0
      %v1793 = vadd.f32 %v1342, %v1792
      %v1794 = vpop.f32.mrf.mxu0
      %1795 = vmatprep.mubr.f32.mxu0 0.0
      %1796 = vmatmul.mubr.f32.gmra.mxu0 %v1718
      %v1797 = vpop.f32.mrf.mxu0
      %v1798 = vadd.f32 %v1347, %v1797
      %v1799 = vpop.f32.mrf.mxu0
      %1800 = vmatprep.mubr.f32.mxu0 0.0
      %1801 = vmatmul.mubr.f32.gmra.mxu0 %v1721
      %v1802 = vpop.f32.mrf.mxu0
      %v1803 = vadd.f32 %v1352, %v1802
      %v1804 = vpop.f32.mrf.mxu0
      %1805 = vmatprep.mubr.f32.mxu0 0.0
      %1806 = vmatmul.mubr.f32.gmra.mxu0 %v1724
      %v1807 = vpop.f32.mrf.mxu0
      %v1808 = vadd.f32 %v1357, %v1807
      %v1809 = vpop.f32.mrf.mxu0
      %1810 = vdwg.mxu0
      %v1811 = vmax.f32 %v1454, %v1464
      %v1812 = vmax.f32 %v1459, %v1469
      %v1813 = vmax.f32 %v1567, %v1577
      %v1814 = vmax.f32 %v1572, %v1582
      %v1815 = vmax.f32 %v1680, %v1690
      %v1816 = vmax.f32 %v1685, %v1695
      %v1817 = vmax.f32 %v1793, %v1803
      %v1818 = vmax.f32 %v1798, %v1808
      %v1819 = vld [vmem:[%s11] sm:$0xff]
      %v1820 = vld [vmem:[%s11 + $0x8] sm:$0xff]
      %v1821 = vld [vmem:[%s11 + $0x10] sm:$0xff]
      %v1822 = vld [vmem:[%s11 + $0x18] sm:$0xff]
      %v1823 = vld [vmem:[%s11 + $0x20] sm:$0xff]
      %v1824 = vld [vmem:[%s11 + $0x28] sm:$0xff]
      %v1825 = vld [vmem:[%s11 + $0x30] sm:$0xff]
      %v1826 = vld [vmem:[%s11 + $0x38] sm:$0xff]
      %v1828 = vsel %vm869, %v1819, 0
      %v1831 = vsel %vm869, %v1820, 0
      %1833 = vmatprep.subr.mxu0 0.0
      %1834 = vmatpush1.msra.mxu0 0.0
      %1835 = vmatprep.subr.mxu0 0.0
      %1836 = vmatpush1.msra.mxu0 0.0
      %1837 = vmatprep.subr.mxu0 0.0
      %1838 = vmatpush1.msra.mxu0 0.0
      %1839 = vmatprep.subr.mxu0 0.0
      %1840 = vmatpush1.msra.mxu0 0.0
      %1841 = vmatprep.subr.mxu0 0.0
      %1842 = vmatpush1.msra.mxu0 0.0
      %1843 = vmatprep.subr.mxu0 0.0
      %1844 = vmatpush1.msra.mxu0 0.0
      %1845 = vmatprep.subr.mxu0 0.0
      %1846 = vmatpush1.msra.mxu0 0.0
      %1847 = vmatprep.subr.mxu0 0.0
      %1848 = vmatpush1.msra.mxu0 0.0
      %1849 = vmatprep.subr.mxu0 0.0
      %1850 = vmatpush1.msra.mxu0 0.0
      %1851 = vmatprep.subr.mxu0 0.0
      %1852 = vmatpush1.msra.mxu0 0.0
      %1853 = vmatprep.subr.mxu0 0.0
      %1854 = vmatpush1.msra.mxu0 0.0
      %1855 = vmatprep.subr.mxu0 0.0
      %1856 = vmatpush1.msra.mxu0 0.0
      %1857 = vmatprep.subr.mxu0 0.0
      %1858 = vmatpush1.msra.mxu0 0.0
      %1859 = vmatprep.subr.mxu0 0.0
      %1860 = vmatpush1.msra.mxu0 0.0
      %1861 = vmatprep.subr.mxu0 0.0
      %1862 = vmatpush1.msra.mxu0 0.0
      %1863 = vmatprep.subr.mxu0 0.0
      %1864 = vmatpush1.msra.mxu0 %v949
      %1865 = vmatprep.subr.mxu0 0.0
      %1866 = vmatpush2.msra.mxu0 0.0
      %1867 = vmatprep.subr.mxu0 0.0
      %1868 = vmatpush2.msra.mxu0 0.0
      %1869 = vmatprep.subr.mxu0 0.0
      %1870 = vmatpush2.msra.mxu0 0.0
      %1871 = vmatprep.subr.mxu0 0.0
      %1872 = vmatpush2.msra.mxu0 0.0
      %1873 = vmatprep.subr.mxu0 0.0
      %1874 = vmatpush2.msra.mxu0 0.0
      %1875 = vmatprep.subr.mxu0 0.0
      %1876 = vmatpush2.msra.mxu0 0.0
      %1877 = vmatprep.subr.mxu0 0.0
      %1878 = vmatpush2.msra.mxu0 0.0
      %1879 = vmatprep.subr.mxu0 0.0
      %1880 = vmatpush2.msra.mxu0 0.0
      %1881 = vmatprep.subr.mxu0 0.0
      %1882 = vmatpush2.msra.mxu0 0.0
      %1883 = vmatprep.subr.mxu0 0.0
      %1884 = vmatpush2.msra.mxu0 0.0
      %1885 = vmatprep.subr.mxu0 0.0
      %1886 = vmatpush2.msra.mxu0 0.0
      %1887 = vmatprep.subr.mxu0 0.0
      %1888 = vmatpush2.msra.mxu0 0.0
      %1889 = vmatprep.subr.mxu0 0.0
      %1890 = vmatpush2.msra.mxu0 0.0
      %1891 = vmatprep.subr.mxu0 0.0
      %1892 = vmatpush2.msra.mxu0 0.0
      %1893 = vmatprep.subr.mxu0 0.0
      %1894 = vmatpush2.msra.mxu0 0.0
      %1895 = vmatprep.subr.mxu0 0.0
      %1896 = vmatpush2.msra.mxu0 0.0
      %1897 = vmatprep.mubr.f32.mxu0 0.0
      %1898 = vmatmul.mubr.f32.gmra.mxu0 %v1828
      %v1899 = vpop.f32.mrf.mxu0
      %v1900 = vadd.f32 0.0, %v1899
      %v1901 = vpop.f32.mrf.mxu0
      %1902 = vmatprep.mubr.f32.mxu0 0.0
      %1903 = vmatmul.mubr.f32.gmra.mxu0 %v1831
      %v1904 = vpop.f32.mrf.mxu0
      %v1905 = vadd.f32 0.0, %v1904
      %v1906 = vpop.f32.mrf.mxu0
      %1907 = vdwg.mxu0
      %v1909 = vsel %vm869, %v1821, 0
      %v1912 = vsel %vm869, %v1822, 0
      %1914 = vmatprep.subr.mxu0 0.0
      %1915 = vmatpush1.msra.mxu0 0.0
      %1916 = vmatprep.subr.mxu0 0.0
      %1917 = vmatpush1.msra.mxu0 0.0
      %1918 = vmatprep.subr.mxu0 0.0
      %1919 = vmatpush1.msra.mxu0 0.0
      %1920 = vmatprep.subr.mxu0 0.0
      %1921 = vmatpush1.msra.mxu0 0.0
      %1922 = vmatprep.subr.mxu0 0.0
      %1923 = vmatpush1.msra.mxu0 0.0
      %1924 = vmatprep.subr.mxu0 0.0
      %1925 = vmatpush1.msra.mxu0 0.0
      %1926 = vmatprep.subr.mxu0 0.0
      %1927 = vmatpush1.msra.mxu0 0.0
      %1928 = vmatprep.subr.mxu0 0.0
      %1929 = vmatpush1.msra.mxu0 0.0
      %1930 = vmatprep.subr.mxu0 0.0
      %1931 = vmatpush1.msra.mxu0 0.0
      %1932 = vmatprep.subr.mxu0 0.0
      %1933 = vmatpush1.msra.mxu0 0.0
      %1934 = vmatprep.subr.mxu0 0.0
      %1935 = vmatpush1.msra.mxu0 0.0
      %1936 = vmatprep.subr.mxu0 0.0
      %1937 = vmatpush1.msra.mxu0 0.0
      %1938 = vmatprep.subr.mxu0 0.0
      %1939 = vmatpush1.msra.mxu0 0.0
      %1940 = vmatprep.subr.mxu0 0.0
      %1941 = vmatpush1.msra.mxu0 0.0
      %1942 = vmatprep.subr.mxu0 0.0
      %1943 = vmatpush1.msra.mxu0 0.0
      %1944 = vmatprep.subr.mxu0 0.0
      %1945 = vmatpush1.msra.mxu0 %v954
      %1946 = vmatprep.subr.mxu0 0.0
      %1947 = vmatpush2.msra.mxu0 0.0
      %1948 = vmatprep.subr.mxu0 0.0
      %1949 = vmatpush2.msra.mxu0 0.0
      %1950 = vmatprep.subr.mxu0 0.0
      %1951 = vmatpush2.msra.mxu0 0.0
      %1952 = vmatprep.subr.mxu0 0.0
      %1953 = vmatpush2.msra.mxu0 0.0
      %1954 = vmatprep.subr.mxu0 0.0
      %1955 = vmatpush2.msra.mxu0 0.0
      %1956 = vmatprep.subr.mxu0 0.0
      %1957 = vmatpush2.msra.mxu0 0.0
      %1958 = vmatprep.subr.mxu0 0.0
      %1959 = vmatpush2.msra.mxu0 0.0
      %1960 = vmatprep.subr.mxu0 0.0
      %1961 = vmatpush2.msra.mxu0 0.0
      %1962 = vmatprep.subr.mxu0 0.0
      %1963 = vmatpush2.msra.mxu0 0.0
      %1964 = vmatprep.subr.mxu0 0.0
      %1965 = vmatpush2.msra.mxu0 0.0
      %1966 = vmatprep.subr.mxu0 0.0
      %1967 = vmatpush2.msra.mxu0 0.0
      %1968 = vmatprep.subr.mxu0 0.0
      %1969 = vmatpush2.msra.mxu0 0.0
      %1970 = vmatprep.subr.mxu0 0.0
      %1971 = vmatpush2.msra.mxu0 0.0
      %1972 = vmatprep.subr.mxu0 0.0
      %1973 = vmatpush2.msra.mxu0 0.0
      %1974 = vmatprep.subr.mxu0 0.0
      %1975 = vmatpush2.msra.mxu0 0.0
      %1976 = vmatprep.subr.mxu0 0.0
      %1977 = vmatpush2.msra.mxu0 0.0
      %1978 = vmatprep.mubr.f32.mxu0 0.0
      %1979 = vmatmul.mubr.f32.gmra.mxu0 %v1909
      %v1980 = vpop.f32.mrf.mxu0
      %v1981 = vadd.f32 0.0, %v1980
      %v1982 = vpop.f32.mrf.mxu0
      %1983 = vmatprep.mubr.f32.mxu0 0.0
      %1984 = vmatmul.mubr.f32.gmra.mxu0 %v1912
      %v1985 = vpop.f32.mrf.mxu0
      %v1986 = vadd.f32 0.0, %v1985
      %v1987 = vpop.f32.mrf.mxu0
      %1988 = vdwg.mxu0
      %v1990 = vsel %vm869, %v1823, 0
      %v1993 = vsel %vm869, %v1824, 0
      %1995 = vmatprep.subr.mxu0 0.0
      %1996 = vmatpush1.msra.mxu0 0.0
      %1997 = vmatprep.subr.mxu0 0.0
      %1998 = vmatpush1.msra.mxu0 0.0
      %1999 = vmatprep.subr.mxu0 0.0
      %2000 = vmatpush1.msra.mxu0 0.0
      %2001 = vmatprep.subr.mxu0 0.0
      %2002 = vmatpush1.msra.mxu0 0.0
      %2003 = vmatprep.subr.mxu0 0.0
      %2004 = vmatpush1.msra.mxu0 0.0
      %2005 = vmatprep.subr.mxu0 0.0
      %2006 = vmatpush1.msra.mxu0 0.0
      %2007 = vmatprep.subr.mxu0 0.0
      %2008 = vmatpush1.msra.mxu0 0.0
      %2009 = vmatprep.subr.mxu0 0.0
      %2010 = vmatpush1.msra.mxu0 0.0
      %2011 = vmatprep.subr.mxu0 0.0
      %2012 = vmatpush1.msra.mxu0 0.0
      %2013 = vmatprep.subr.mxu0 0.0
      %2014 = vmatpush1.msra.mxu0 0.0
      %2015 = vmatprep.subr.mxu0 0.0
      %2016 = vmatpush1.msra.mxu0 0.0
      %2017 = vmatprep.subr.mxu0 0.0
      %2018 = vmatpush1.msra.mxu0 0.0
      %2019 = vmatprep.subr.mxu0 0.0
      %2020 = vmatpush1.msra.mxu0 0.0
      %2021 = vmatprep.subr.mxu0 0.0
      %2022 = vmatpush1.msra.mxu0 0.0
      %2023 = vmatprep.subr.mxu0 0.0
      %2024 = vmatpush1.msra.mxu0 0.0
      %2025 = vmatprep.subr.mxu0 0.0
      %2026 = vmatpush1.msra.mxu0 %v959
      %2027 = vmatprep.subr.mxu0 0.0
      %2028 = vmatpush2.msra.mxu0 0.0
      %2029 = vmatprep.subr.mxu0 0.0
      %2030 = vmatpush2.msra.mxu0 0.0
      %2031 = vmatprep.subr.mxu0 0.0
      %2032 = vmatpush2.msra.mxu0 0.0
      %2033 = vmatprep.subr.mxu0 0.0
      %2034 = vmatpush2.msra.mxu0 0.0
      %2035 = vmatprep.subr.mxu0 0.0
      %2036 = vmatpush2.msra.mxu0 0.0
      %2037 = vmatprep.subr.mxu0 0.0
      %2038 = vmatpush2.msra.mxu0 0.0
      %2039 = vmatprep.subr.mxu0 0.0
      %2040 = vmatpush2.msra.mxu0 0.0
      %2041 = vmatprep.subr.mxu0 0.0
      %2042 = vmatpush2.msra.mxu0 0.0
      %2043 = vmatprep.subr.mxu0 0.0
      %2044 = vmatpush2.msra.mxu0 0.0
      %2045 = vmatprep.subr.mxu0 0.0
      %2046 = vmatpush2.msra.mxu0 0.0
      %2047 = vmatprep.subr.mxu0 0.0
      %2048 = vmatpush2.msra.mxu0 0.0
      %2049 = vmatprep.subr.mxu0 0.0
      %2050 = vmatpush2.msra.mxu0 0.0
      %2051 = vmatprep.subr.mxu0 0.0
      %2052 = vmatpush2.msra.mxu0 0.0
      %2053 = vmatprep.subr.mxu0 0.0
      %2054 = vmatpush2.msra.mxu0 0.0
      %2055 = vmatprep.subr.mxu0 0.0
      %2056 = vmatpush2.msra.mxu0 0.0
      %2057 = vmatprep.subr.mxu0 0.0
      %2058 = vmatpush2.msra.mxu0 0.0
      %2059 = vmatprep.mubr.f32.mxu0 0.0
      %2060 = vmatmul.mubr.f32.gmra.mxu0 %v1990
      %v2061 = vpop.f32.mrf.mxu0
      %v2062 = vadd.f32 0.0, %v2061
      %v2063 = vpop.f32.mrf.mxu0
      %2064 = vmatprep.mubr.f32.mxu0 0.0
      %2065 = vmatmul.mubr.f32.gmra.mxu0 %v1993
      %v2066 = vpop.f32.mrf.mxu0
      %v2067 = vadd.f32 0.0, %v2066
      %v2068 = vpop.f32.mrf.mxu0
      %2069 = vdwg.mxu0
      %v2071 = vsel %vm869, %v1825, 0
      %v2074 = vsel %vm869, %v1826, 0
      %2076 = vmatprep.subr.mxu0 0.0
      %2077 = vmatpush1.msra.mxu0 0.0
      %2078 = vmatprep.subr.mxu0 0.0
      %2079 = vmatpush1.msra.mxu0 0.0
      %2080 = vmatprep.subr.mxu0 0.0
      %2081 = vmatpush1.msra.mxu0 0.0
      %2082 = vmatprep.subr.mxu0 0.0
      %2083 = vmatpush1.msra.mxu0 0.0
      %2084 = vmatprep.subr.mxu0 0.0
      %2085 = vmatpush1.msra.mxu0 0.0
      %2086 = vmatprep.subr.mxu0 0.0
      %2087 = vmatpush1.msra.mxu0 0.0
      %2088 = vmatprep.subr.mxu0 0.0
      %2089 = vmatpush1.msra.mxu0 0.0
      %2090 = vmatprep.subr.mxu0 0.0
      %2091 = vmatpush1.msra.mxu0 0.0
      %2092 = vmatprep.subr.mxu0 0.0
      %2093 = vmatpush1.msra.mxu0 0.0
      %2094 = vmatprep.subr.mxu0 0.0
      %2095 = vmatpush1.msra.mxu0 0.0
      %2096 = vmatprep.subr.mxu0 0.0
      %2097 = vmatpush1.msra.mxu0 0.0
      %2098 = vmatprep.subr.mxu0 0.0
      %2099 = vmatpush1.msra.mxu0 0.0
      %2100 = vmatprep.subr.mxu0 0.0
      %2101 = vmatpush1.msra.mxu0 0.0
      %2102 = vmatprep.subr.mxu0 0.0
      %2103 = vmatpush1.msra.mxu0 0.0
      %2104 = vmatprep.subr.mxu0 0.0
      %2105 = vmatpush1.msra.mxu0 0.0
      %2106 = vmatprep.subr.mxu0 0.0
      %2107 = vmatpush1.msra.mxu0 %v964
      %2108 = vmatprep.subr.mxu0 0.0
      %2109 = vmatpush2.msra.mxu0 0.0
      %2110 = vmatprep.subr.mxu0 0.0
      %2111 = vmatpush2.msra.mxu0 0.0
      %2112 = vmatprep.subr.mxu0 0.0
      %2113 = vmatpush2.msra.mxu0 0.0
      %2114 = vmatprep.subr.mxu0 0.0
      %2115 = vmatpush2.msra.mxu0 0.0
      %2116 = vmatprep.subr.mxu0 0.0
      %2117 = vmatpush2.msra.mxu0 0.0
      %2118 = vmatprep.subr.mxu0 0.0
      %2119 = vmatpush2.msra.mxu0 0.0
      %2120 = vmatprep.subr.mxu0 0.0
      %2121 = vmatpush2.msra.mxu0 0.0
      %2122 = vmatprep.subr.mxu0 0.0
      %2123 = vmatpush2.msra.mxu0 0.0
      %2124 = vmatprep.subr.mxu0 0.0
      %2125 = vmatpush2.msra.mxu0 0.0
      %2126 = vmatprep.subr.mxu0 0.0
      %2127 = vmatpush2.msra.mxu0 0.0
      %2128 = vmatprep.subr.mxu0 0.0
      %2129 = vmatpush2.msra.mxu0 0.0
      %2130 = vmatprep.subr.mxu0 0.0
      %2131 = vmatpush2.msra.mxu0 0.0
      %2132 = vmatprep.subr.mxu0 0.0
      %2133 = vmatpush2.msra.mxu0 0.0
      %2134 = vmatprep.subr.mxu0 0.0
      %2135 = vmatpush2.msra.mxu0 0.0
      %2136 = vmatprep.subr.mxu0 0.0
      %2137 = vmatpush2.msra.mxu0 0.0
      %2138 = vmatprep.subr.mxu0 0.0
      %2139 = vmatpush2.msra.mxu0 0.0
      %2140 = vmatprep.mubr.f32.mxu0 0.0
      %2141 = vmatmul.mubr.f32.gmra.mxu0 %v2071
      %v2142 = vpop.f32.mrf.mxu0
      %v2143 = vadd.f32 0.0, %v2142
      %v2144 = vpop.f32.mrf.mxu0
      %2145 = vmatprep.mubr.f32.mxu0 0.0
      %2146 = vmatmul.mubr.f32.gmra.mxu0 %v2074
      %v2147 = vpop.f32.mrf.mxu0
      %v2148 = vadd.f32 0.0, %v2147
      %v2149 = vpop.f32.mrf.mxu0
      %2150 = vdwg.mxu0
      %v2151 = vadd.f32 %v1311, %v1811
      %v2152 = vadd.f32 %v1312, %v1812
      %v2153 = vadd.f32 %v1313, %v1813
      %v2154 = vadd.f32 %v1314, %v1814
      %v2155 = vadd.f32 %v1315, %v1815
      %v2156 = vadd.f32 %v1316, %v1816
      %v2157 = vadd.f32 %v1317, %v1817
      %v2158 = vadd.f32 %v1318, %v1818
      %v2159 = vcombine.low %v2151, %v2155
      %v2160 = vcombine.high %v2151, %v2155
      %v2162 = vunpack.c.l.s4 1983009808
      %v2163 = vunpack.c.0.s8 %v2162
      %v2164 = vlaneseq
      %v2165 = vshrl.u32 %v2164, 7
      %v2166 = vsub.s32 %v2163, %v2165
      %v2167 = vrot.slane %v2159, %v2166
      %v2169 = vunpack.c.l.s4 1983009808
      %v2170 = vunpack.c.0.s8 %v2169
      %v2171 = vlaneseq
      %v2172 = vshrl.u32 %v2171, 7
      %v2173 = vsub.s32 %v2170, %v2172
      %v2174 = vrot.slane %v2160, %v2173
      %v2175 = vcombine.low %v2153, %v2157
      %v2176 = vcombine.high %v2153, %v2157
      %v2178 = vunpack.c.l.s4 1983009808
      %v2179 = vunpack.c.0.s8 %v2178
      %v2180 = vlaneseq
      %v2181 = vshrl.u32 %v2180, 7
      %v2182 = vsub.s32 %v2179, %v2181
      %v2183 = vrot.slane %v2175, %v2182
      %v2185 = vunpack.c.l.s4 1983009808
      %v2186 = vunpack.c.0.s8 %v2185
      %v2187 = vlaneseq
      %v2188 = vshrl.u32 %v2187, 7
      %v2189 = vsub.s32 %v2186, %v2188
      %v2190 = vrot.slane %v2176, %v2189
      %v2191 = vcombine.low %v2167, %v2183
      %v2192 = vcombine.high %v2167, %v2183
      %v2194 = vunpack.c.l.s4 1934713408
      %v2195 = vunpack.c.0.s8 %v2194
      %v2196 = vlaneseq
      %v2197 = vshrl.u32 %v2196, 7
      %v2198 = vsub.s32 %v2195, %v2197
      %v2199 = vrot.slane %v2191, %v2198
      %v2201 = vunpack.c.l.s4 1934713408
      %v2202 = vunpack.c.0.s8 %v2201
      %v2203 = vlaneseq
      %v2204 = vshrl.u32 %v2203, 7
      %v2205 = vsub.s32 %v2202, %v2204
      %v2206 = vrot.slane %v2192, %v2205
      %v2207 = vcombine.low %v2174, %v2190
      %v2208 = vcombine.high %v2174, %v2190
      %v2210 = vunpack.c.l.s4 1934713408
      %v2211 = vunpack.c.0.s8 %v2210
      %v2212 = vlaneseq
      %v2213 = vshrl.u32 %v2212, 7
      %v2214 = vsub.s32 %v2211, %v2213
      %v2215 = vrot.slane %v2207, %v2214
      %v2217 = vunpack.c.l.s4 1934713408
      %v2218 = vunpack.c.0.s8 %v2217
      %v2219 = vlaneseq
      %v2220 = vshrl.u32 %v2219, 7
      %v2221 = vsub.s32 %v2218, %v2220
      %v2222 = vrot.slane %v2208, %v2221
      %v2223 = vcombine.high %v2199, 0.0
      %v2224 = vcombine.high %v2206, 0.0
      %v2225 = vcombine.high %v2215, 0.0
      %v2226 = vcombine.high %v2222, 0.0
      %v2227 = vcombine.low %v2152, %v2156
      %v2228 = vcombine.high %v2152, %v2156
      %v2230 = vunpack.c.l.s4 1983009808
      %v2231 = vunpack.c.0.s8 %v2230
      %v2232 = vlaneseq
      %v2233 = vshrl.u32 %v2232, 7
      %v2234 = vsub.s32 %v2231, %v2233
      %v2235 = vrot.slane %v2227, %v2234
      %v2237 = vunpack.c.l.s4 1983009808
      %v2238 = vunpack.c.0.s8 %v2237
      %v2239 = vlaneseq
      %v2240 = vshrl.u32 %v2239, 7
      %v2241 = vsub.s32 %v2238, %v2240
      %v2242 = vrot.slane %v2228, %v2241
      %v2243 = vcombine.low %v2154, %v2158
      %v2244 = vcombine.high %v2154, %v2158
      %v2246 = vunpack.c.l.s4 1983009808
      %v2247 = vunpack.c.0.s8 %v2246
      %v2248 = vlaneseq
      %v2249 = vshrl.u32 %v2248, 7
      %v2250 = vsub.s32 %v2247, %v2249
      %v2251 = vrot.slane %v2243, %v2250
      %v2253 = vunpack.c.l.s4 1983009808
      %v2254 = vunpack.c.0.s8 %v2253
      %v2255 = vlaneseq
      %v2256 = vshrl.u32 %v2255, 7
      %v2257 = vsub.s32 %v2254, %v2256
      %v2258 = vrot.slane %v2244, %v2257
      %v2259 = vcombine.low %v2235, %v2251
      %v2260 = vcombine.high %v2235, %v2251
      %v2262 = vunpack.c.l.s4 1934713408
      %v2263 = vunpack.c.0.s8 %v2262
      %v2264 = vlaneseq
      %v2265 = vshrl.u32 %v2264, 7
      %v2266 = vsub.s32 %v2263, %v2265
      %v2267 = vrot.slane %v2259, %v2266
      %v2269 = vunpack.c.l.s4 1934713408
      %v2270 = vunpack.c.0.s8 %v2269
      %v2271 = vlaneseq
      %v2272 = vshrl.u32 %v2271, 7
      %v2273 = vsub.s32 %v2270, %v2272
      %v2274 = vrot.slane %v2260, %v2273
      %v2275 = vcombine.low %v2242, %v2258
      %v2276 = vcombine.high %v2242, %v2258
      %v2278 = vunpack.c.l.s4 1934713408
      %v2279 = vunpack.c.0.s8 %v2278
      %v2280 = vlaneseq
      %v2281 = vshrl.u32 %v2280, 7
      %v2282 = vsub.s32 %v2279, %v2281
      %v2283 = vrot.slane %v2275, %v2282
      %v2285 = vunpack.c.l.s4 1934713408
      %v2286 = vunpack.c.0.s8 %v2285
      %v2287 = vlaneseq
      %v2288 = vshrl.u32 %v2287, 7
      %v2289 = vsub.s32 %v2286, %v2288
      %v2290 = vrot.slane %v2276, %v2289
      %v2291 = vcombine.high %v2267, 0.0
      %v2292 = vcombine.high %v2274, 0.0
      %v2293 = vcombine.high %v2283, 0.0
      %v2294 = vcombine.high %v2290, 0.0
      %2296 = vrot.lane.b32.xlu0 %v2223, 16
      %v2297 = vpop.permute.xlu0 %2296
      %2300 = vrot.lane.b32.xlu0 %v2206, 32
      %v2301 = vpop.permute.xlu0 %2300
      %2304 = vrot.lane.b32.xlu0 %v2224, 48
      %v2305 = vpop.permute.xlu0 %2304
      %2308 = vrot.lane.b32.xlu0 %v2215, 64
      %v2309 = vpop.permute.xlu0 %2308
      %2312 = vrot.lane.b32.xlu0 %v2225, 80
      %v2313 = vpop.permute.xlu0 %2312
      %2316 = vrot.lane.b32.xlu0 %v2222, 96
      %v2317 = vpop.permute.xlu0 %2316
      %2320 = vrot.lane.b32.xlu0 %v2226, 112
      %v2321 = vpop.permute.xlu0 %2320
      %2324 = vrot.lane.b32.xlu0 %v2291, 16
      %v2325 = vpop.permute.xlu0 %2324
      %2328 = vrot.lane.b32.xlu0 %v2274, 32
      %v2329 = vpop.permute.xlu0 %2328
      %2332 = vrot.lane.b32.xlu0 %v2292, 48
      %v2333 = vpop.permute.xlu0 %2332
      %2336 = vrot.lane.b32.xlu0 %v2283, 64
      %v2337 = vpop.permute.xlu0 %2336
      %2340 = vrot.lane.b32.xlu0 %v2293, 80
      %v2341 = vpop.permute.xlu0 %2340
      %2344 = vrot.lane.b32.xlu0 %v2290, 96
      %v2345 = vpop.permute.xlu0 %2344
      %2348 = vrot.lane.b32.xlu0 %v2294, 112
      %v2349 = vpop.permute.xlu0 %2348
      %vm2351 = vcmask 130048
      %v2352 = vsel %vm2351, %v2199, %v2297
      %v2353 = vsel %vm542, %v2352, %v2301
      %vm2354 = vcmask 392192
      %v2355 = vsel %vm2354, %v2353, %v2305
      %vm2356 = vcmask 523264
      %v2357 = vsel %vm2356, %v2355, %v2309
      %vm2358 = vcmask 654336
      %v2359 = vsel %vm2358, %v2357, %v2313
      %vm2360 = vcmask 785408
      %v2361 = vsel %vm2360, %v2359, %v2317
      %vm2362 = vcmask 916480
      %v2363 = vsel %vm2362, %v2361, %v2321
      %v2364 = vsel %vm2351, %v2267, %v2325
      %v2365 = vsel %vm542, %v2364, %v2329
      %v2366 = vsel %vm2354, %v2365, %v2333
      %v2367 = vsel %vm2356, %v2366, %v2337
      %v2368 = vsel %vm2358, %v2367, %v2341
      %v2369 = vsel %vm2360, %v2368, %v2345
      %v2370 = vsel %vm2362, %v2369, %v2349
      %v2373 = vcombine.low %v2363, %v2370
      %2375 = vst [vmem:[%s521] sm:$0xff] %v2373
      %v2376 = vld [vmem:[%s502] sm:$0xff]
      %s2377 = scalar_lea.vmem %s521, 8
      %2378 = vst [vmem:[%s2377] sm:$0xff] %v2376
      %v2379 = vcombine.low %v1900, %v2062
      %v2380 = vcombine.high %v1900, %v2062
      %v2382 = vunpack.c.l.s4 1983009808
      %v2383 = vunpack.c.0.s8 %v2382
      %v2384 = vlaneseq
      %v2385 = vshrl.u32 %v2384, 7
      %v2386 = vsub.s32 %v2383, %v2385
      %v2387 = vrot.slane %v2379, %v2386
      %v2389 = vunpack.c.l.s4 1983009808
      %v2390 = vunpack.c.0.s8 %v2389
      %v2391 = vlaneseq
      %v2392 = vshrl.u32 %v2391, 7
      %v2393 = vsub.s32 %v2390, %v2392
      %v2394 = vrot.slane %v2380, %v2393
      %v2395 = vcombine.low %v1981, %v2143
      %v2396 = vcombine.high %v1981, %v2143
      %v2398 = vunpack.c.l.s4 1983009808
      %v2399 = vunpack.c.0.s8 %v2398
      %v2400 = vlaneseq
      %v2401 = vshrl.u32 %v2400, 7
      %v2402 = vsub.s32 %v2399, %v2401
      %v2403 = vrot.slane %v2395, %v2402
      %v2405 = vunpack.c.l.s4 1983009808
      %v2406 = vunpack.c.0.s8 %v2405
      %v2407 = vlaneseq
      %v2408 = vshrl.u32 %v2407, 7
      %v2409 = vsub.s32 %v2406, %v2408
      %v2410 = vrot.slane %v2396, %v2409
      %v2411 = vcombine.low %v2387, %v2403
      %v2412 = vcombine.high %v2387, %v2403
      %v2414 = vunpack.c.l.s4 1934713408
      %v2415 = vunpack.c.0.s8 %v2414
      %v2416 = vlaneseq
      %v2417 = vshrl.u32 %v2416, 7
      %v2418 = vsub.s32 %v2415, %v2417
      %v2419 = vrot.slane %v2411, %v2418
      %v2421 = vunpack.c.l.s4 1934713408
      %v2422 = vunpack.c.0.s8 %v2421
      %v2423 = vlaneseq
      %v2424 = vshrl.u32 %v2423, 7
      %v2425 = vsub.s32 %v2422, %v2424
      %v2426 = vrot.slane %v2412, %v2425
      %v2427 = vcombine.low %v2394, %v2410
      %v2428 = vcombine.high %v2394, %v2410
      %v2430 = vunpack.c.l.s4 1934713408
      %v2431 = vunpack.c.0.s8 %v2430
      %v2432 = vlaneseq
      %v2433 = vshrl.u32 %v2432, 7
      %v2434 = vsub.s32 %v2431, %v2433
      %v2435 = vrot.slane %v2427, %v2434
      %v2437 = vunpack.c.l.s4 1934713408
      %v2438 = vunpack.c.0.s8 %v2437
      %v2439 = vlaneseq
      %v2440 = vshrl.u32 %v2439, 7
      %v2441 = vsub.s32 %v2438, %v2440
      %v2442 = vrot.slane %v2428, %v2441
      %v2443 = vcombine.high %v2419, 0.0
      %v2444 = vcombine.high %v2426, 0.0
      %v2445 = vcombine.high %v2435, 0.0
      %v2446 = vcombine.high %v2442, 0.0
      %v2447 = vcombine.low %v1905, %v2067
      %v2448 = vcombine.high %v1905, %v2067
      %v2450 = vunpack.c.l.s4 1983009808
      %v2451 = vunpack.c.0.s8 %v2450
      %v2452 = vlaneseq
      %v2453 = vshrl.u32 %v2452, 7
      %v2454 = vsub.s32 %v2451, %v2453
      %v2455 = vrot.slane %v2447, %v2454
      %v2457 = vunpack.c.l.s4 1983009808
      %v2458 = vunpack.c.0.s8 %v2457
      %v2459 = vlaneseq
      %v2460 = vshrl.u32 %v2459, 7
      %v2461 = vsub.s32 %v2458, %v2460
      %v2462 = vrot.slane %v2448, %v2461
      %v2463 = vcombine.low %v1986, %v2148
      %v2464 = vcombine.high %v1986, %v2148
      %v2466 = vunpack.c.l.s4 1983009808
      %v2467 = vunpack.c.0.s8 %v2466
      %v2468 = vlaneseq
      %v2469 = vshrl.u32 %v2468, 7
      %v2470 = vsub.s32 %v2467, %v2469
      %v2471 = vrot.slane %v2463, %v2470
      %v2473 = vunpack.c.l.s4 1983009808
      %v2474 = vunpack.c.0.s8 %v2473
      %v2475 = vlaneseq
      %v2476 = vshrl.u32 %v2475, 7
      %v2477 = vsub.s32 %v2474, %v2476
      %v2478 = vrot.slane %v2464, %v2477
      %v2479 = vcombine.low %v2455, %v2471
      %v2480 = vcombine.high %v2455, %v2471
      %v2482 = vunpack.c.l.s4 1934713408
      %v2483 = vunpack.c.0.s8 %v2482
      %v2484 = vlaneseq
      %v2485 = vshrl.u32 %v2484, 7
      %v2486 = vsub.s32 %v2483, %v2485
      %v2487 = vrot.slane %v2479, %v2486
      %v2489 = vunpack.c.l.s4 1934713408
      %v2490 = vunpack.c.0.s8 %v2489
      %v2491 = vlaneseq
      %v2492 = vshrl.u32 %v2491, 7
      %v2493 = vsub.s32 %v2490, %v2492
      %v2494 = vrot.slane %v2480, %v2493
      %v2495 = vcombine.low %v2462, %v2478
      %v2496 = vcombine.high %v2462, %v2478
      %v2498 = vunpack.c.l.s4 1934713408
      %v2499 = vunpack.c.0.s8 %v2498
      %v2500 = vlaneseq
      %v2501 = vshrl.u32 %v2500, 7
      %v2502 = vsub.s32 %v2499, %v2501
      %v2503 = vrot.slane %v2495, %v2502
      %v2505 = vunpack.c.l.s4 1934713408
      %v2506 = vunpack.c.0.s8 %v2505
      %v2507 = vlaneseq
      %v2508 = vshrl.u32 %v2507, 7
      %v2509 = vsub.s32 %v2506, %v2508
      %v2510 = vrot.slane %v2496, %v2509
      %v2511 = vcombine.high %v2487, 0.0
      %v2512 = vcombine.high %v2494, 0.0
      %v2513 = vcombine.high %v2503, 0.0
      %v2514 = vcombine.high %v2510, 0.0
      %2516 = vrot.lane.b32.xlu0 %v2443, 16
      %v2517 = vpop.permute.xlu0 %2516
      %2520 = vrot.lane.b32.xlu0 %v2426, 32
      %v2521 = vpop.permute.xlu0 %2520
      %2524 = vrot.lane.b32.xlu0 %v2444, 48
      %v2525 = vpop.permute.xlu0 %2524
      %2528 = vrot.lane.b32.xlu0 %v2435, 64
      %v2529 = vpop.permute.xlu0 %2528
      %2532 = vrot.lane.b32.xlu0 %v2445, 80
      %v2533 = vpop.permute.xlu0 %2532
      %2536 = vrot.lane.b32.xlu0 %v2442, 96
      %v2537 = vpop.permute.xlu0 %2536
      %2540 = vrot.lane.b32.xlu0 %v2446, 112
      %v2541 = vpop.permute.xlu0 %2540
      %2544 = vrot.lane.b32.xlu0 %v2511, 16
      %v2545 = vpop.permute.xlu0 %2544
      %2548 = vrot.lane.b32.xlu0 %v2494, 32
      %v2549 = vpop.permute.xlu0 %2548
      %2552 = vrot.lane.b32.xlu0 %v2512, 48
      %v2553 = vpop.permute.xlu0 %2552
      %2556 = vrot.lane.b32.xlu0 %v2503, 64
      %v2557 = vpop.permute.xlu0 %2556
      %2560 = vrot.lane.b32.xlu0 %v2513, 80
      %v2561 = vpop.permute.xlu0 %2560
      %2564 = vrot.lane.b32.xlu0 %v2510, 96
      %v2565 = vpop.permute.xlu0 %2564
      %2568 = vrot.lane.b32.xlu0 %v2514, 112
      %v2569 = vpop.permute.xlu0 %2568
      %v2571 = vsel %vm2351, %v2419, %v2517
      %v2572 = vsel %vm542, %v2571, %v2521
      %v2573 = vsel %vm2354, %v2572, %v2525
      %v2574 = vsel %vm2356, %v2573, %v2529
      %v2575 = vsel %vm2358, %v2574, %v2533
      %v2576 = vsel %vm2360, %v2575, %v2537
      %v2577 = vsel %vm2362, %v2576, %v2541
      %v2578 = vsel %vm2351, %v2487, %v2545
      %v2579 = vsel %vm542, %v2578, %v2549
      %v2580 = vsel %vm2354, %v2579, %v2553
      %v2581 = vsel %vm2356, %v2580, %v2557
      %v2582 = vsel %vm2358, %v2581, %v2561
      %v2583 = vsel %vm2360, %v2582, %v2565
      %v2584 = vsel %vm2362, %v2583, %v2569
      %v2587 = vcombine.low %v2577, %v2584
      %s2589 = scalar_lea.vmem %s521, 16
      %2590 = vst [vmem:[%s2589] sm:$0xff] %v2587
      %p2591 = scmp.lt.s32.totalorder %s27, 1
      %s2592 = scalar_select %p2591, %s27, 1
      %p2593 = scmp.lt.s32.totalorder %s28, 0
      %s2594 = scalar_select %p2593, %s28, 0
      %s2595 = smul.addr %s2594, 2
      %s2596 = smul.addr %s2592, 6
      %s2597 = sadd.s32 %s2595, %s2596
      %s2598 = smul.addr %s2597, 4
      %s2599 = scalar_lea.vmem %s12, %s2598
      // Predicated region
      $region69: #{zoom_cat.1} parent=67 // pred_check
        %p2600 = pneg %p328
      $region70: #{zoom_cat.1} parent=67 // pred_check_branch
        %2602 = sbr.rel (%p2600) target = $region72
      $region71: #{zoom_cat.1} parent=67 // pred_region
        _
      $region72: #{zoom_cat.1} parent=67 // pred_fallthru
        _
    $region68: #{zoom_cat.1} parent=5 // pred_fallthru
      _
    %p2603 = scmp.le.s32.totalorder 2, %s18
    // Predicated region
    $region73: #{zoom_cat.1} parent=5 // pred_check
      %p2604 = pneg %p2603
    $region74: #{zoom_cat.1} parent=5 // pred_check_branch
      %2606 = sbr.rel (%p2604) target = $region76
    $region75: #{zoom_cat.1} parent=5 // pred_region
      %s2607 = ssub.s32 %s18, 2
      // Predicated region
      $region77: #{zoom_cat.1} parent=75 // pred_check
        %p2608 = pneg %p334
      $region78: #{zoom_cat.1} parent=75 // pred_check_branch
        %2610 = sbr.rel (%p2608) target = $region80
      $region79: #{zoom_cat.1} parent=75 // pred_region
        %p2611 = scmp.lt.s32.totalorder %s29, 1
        %s2612 = scalar_select %p2611, %s29, 1
        %p2613 = scmp.lt.s32.totalorder %s30, 0
        %s2614 = scalar_select %p2613, %s30, 0
        %s2615 = smul.addr %s2614, 2
        %s2616 = smul.addr %s2612, 6
        %s2617 = sadd.s32 %s2615, %s2616
        %s2618 = smul.addr %s2617, 4
        %s2619 = scalar_lea.vmem %s12, %s2618
      $region80: #{zoom_cat.1} parent=75 // pred_fallthru
        _
    $region76: #{zoom_cat.1} parent=5 // pred_fallthru
      _
  $region6: #{zoom_cat.1} parent=0 // loop_footer
    %s22 = sadd.s32 1, %s18
  $region7: #{zoom_cat.1} parent=0 // loop_footer_branch
    %17 = sbr.rel target = $region3
  $region8: #{zoom_cat.1} parent=0 // loop_exit
    _

</llo_original>
